<compile_context>
chip_gen: v7x
topology: tpu7x:2x2x1
jax: 0.10.0
libtpu: 0.0.40
codegen_flags: <defaults>
</compile_context>

<pallas_src>
import functools

import jax
import jax.numpy as jnp
from jax.experimental import pallas as pl
from jax.experimental.pallas import tpu as pltpu


def _round_up(x, m):
    return (x + m - 1) // m * m


# ----------------------------------------------------------------------------
# Fused decoder kernel
# ----------------------------------------------------------------------------
def _decoder_kernel(*refs, n_layers, N, H, W, cpads, acts):
    """Fused sequential 3x3-conv decoder.

    Ref layout (inputs..., outputs..., scratch...):
      refs[0]                 x_ref   (N*Hp, W*cpads[0])  bf16, zero row-halos
      refs[1+2l], refs[2+2l]  w_ref_l (3, W*cpads[l], W*cpads[l+1])  bf16 Toeplitz
                              b_ref_l (1, W*cpads[l+1])  f32
      refs[1+2*n_layers]      o_ref   (N*H, W*cpads[-1]) f32, lane-dense output
      refs[2+2*n_layers:]     h_l     (N*Hp, W*cpads[l+1]) bf16 VMEM intermediates
    """
    Hp = H + 2
    M = N * Hp - 2          # matmul rows per tap (includes 2 seam rows / sample)
    x_ref = refs[0]
    o_ref = refs[1 + 2 * n_layers]
    h_refs = refs[2 + 2 * n_layers:]

    def conv(src_ref, w_ref, b_ref, act):
        # 3x3 "same" conv: kw tap + input channels folded into the contraction
        # dim via block-Toeplitz weights (SAME-pad zeros baked in) -> 3 wide
        # K=128 MXU matmuls per layer, bf16 operands, f32 accumulation.
        acc = None
        for kh in range(3):
            a = src_ref[kh:kh + M, :]                    # (M, W*cin_pad) bf16 view
            p = jnp.dot(a, w_ref[kh], preferred_element_type=jnp.float32)
            acc = p if acc is None else acc + p
        acc = acc + b_ref[...]                           # (1, W*cout_pad) broadcast
        if act == "relu":
            acc = jnp.maximum(acc, 0.0)
        elif act == "sigmoid":
            acc = jax.nn.sigmoid(acc)
        elif act == "tanh":
            acc = jnp.tanh(acc)
        elif act != "none":
            raise ValueError(act)
        return acc                                       # (M, W*cout_pad) f32

    src = x_ref
    for l in range(n_layers):
        w_ref = refs[1 + 2 * l]
        b_ref = refs[2 + 2 * l]
        acc = conv(src, w_ref, b_ref, acts[l])
        if l == n_layers - 1:
            # Drop the 2 seam rows per sample; full 128-lane stores.
            for n in range(N):
                o_ref[n * H:(n + 1) * H, :] = (
                    acc[n * Hp:n * Hp + H, :].astype(o_ref.dtype))
        else:
            lanes = W * cpads[l + 1]
            h = h_refs[l]
            zrow = jnp.zeros((1, lanes), h.dtype)
            for n in range(N):
                # zero ONLY the halo rows (scratch VMEM is uninitialized),
                # then store the interior rows of this sample.
                h[n * Hp:n * Hp + 1, :] = zrow
                h[n * Hp + Hp - 1:n * Hp + Hp, :] = zrow
                h[n * Hp + 1:n * Hp + 1 + H, :] = (
                    acc[n * Hp:n * Hp + H, :].astype(h.dtype))
            src = h


# ----------------------------------------------------------------------------
# Wrapper-side weight / bias packing (pure JAX glue)
# ----------------------------------------------------------------------------
def _toeplitz_weight(w, cin_pad, cout_pad, W, dtype=jnp.bfloat16):
    """(3,3,Cin,Cout) HWIO conv weight -> (3, W*cin_pad, W*cout_pad).

    SAME-pad boundary zeros are baked in (no kw lane halo on the activations):
      M[kh, wi*cin_pad + ci, wo*cout_pad + co] = w[kh, wi - wo + 1, ci, co]
    when 0 <= wi - wo + 1 < 3, else 0.
    """
    kh_n, kw_n, cin, cout = w.shape
    w_pad = jnp.zeros((kh_n, kw_n, cin_pad, cout_pad), jnp.float32)
    w_pad = w_pad.at[:, :, :cin, :cout].set(w.astype(jnp.float32))
    wi = jnp.arange(W)[:, None]                     # input (source) column
    wo = jnp.arange(W)[None, :]                     # output column
    kw = wi - wo + (kw_n // 2)                      # (W, W)
    valid = (kw >= 0) & (kw < kw_n)
    kw_c = jnp.clip(kw, 0, kw_n - 1)
    g = w_pad[:, kw_c, :, :]                        # (3, W, W, cin_p, cout_p)
    g = jnp.where(valid[None, :, :, None, None], g, 0.0)
    g = jnp.transpose(g, (0, 1, 3, 2, 4))           # (3, wi, cin_p, wo, cout_p)
    return g.reshape(kh_n, W * cin_pad, W * cout_pad).astype(dtype)


def _bias_tile(b, cout_pad, W):
    b_pad = jnp.zeros((cout_pad,), jnp.float32).at[:b.shape[0]].set(
        b.astype(jnp.float32))
    return jnp.tile(b_pad, W).reshape(1, W * cout_pad)


# ----------------------------------------------------------------------------
# Decoder wrapper
# ----------------------------------------------------------------------------
class PallasDecoder:
    """Mirrors taming.models.decoder.Decoder forward: sequential layers + out().

    All conv layers, their activations and the final out() nonlinearity are
    fused into a single pallas_call; intermediates never leave VMEM.
    """

    def __init__(self, params, out="sigmoid"):
        if out not in ("sigmoid", "tanh"):
            raise ValueError(out)
        self.params = params  # list of (w_hwio, b, inner_activation)
        self.out = out

    def __call__(self, x_nchw):
        N, Cin, H, W = x_nchw.shape
        n_layers = len(self.params)
        Hp = H + 2

        # Lane-friendly channel padding at every layer boundary.
        cpads = [_round_up(Cin, 8)]
        for (w, _, _) in self.params:
            cpads.append(_round_up(w.shape[-1], 8))
        cpads = tuple(cpads)

        # ---- wrapper glue: NCHW->NHWC, channel pad, 1-row halo, 2-D, bf16 ---
        x = jnp.transpose(x_nchw, (0, 2, 3, 1))                       # NHWC
        x = jnp.pad(x, ((0, 0), (1, 1), (0, 0), (0, cpads[0] - Cin)))
        x = x.reshape(N * Hp, W * cpads[0]).astype(jnp.bfloat16)

        # final out() nonlinearity is fused into the last conv
        acts = tuple(a for (_, _, a) in self.params[:-1]) + (self.out,)

        flat_inputs = [x]
        for l, (w, b, _) in enumerate(self.params):
            flat_inputs.append(_toeplitz_weight(w, cpads[l], cpads[l + 1], W))
            flat_inputs.append(_bias_tile(b, cpads[l + 1], W))

        def full_spec(shape):
            nd = len(shape)
            return pl.BlockSpec(shape, lambda i, _nd=nd: (0,) * _nd)

        in_specs = [full_spec(a.shape) for a in flat_inputs]
        out_shape = jax.ShapeDtypeStruct((N * H, W * cpads[-1]), jnp.float32)
        out_spec = full_spec(out_shape.shape)
        scratch_shapes = [pltpu.VMEM((N * Hp, W * cpads[l + 1]), jnp.bfloat16)
                          for l in range(n_layers - 1)]

        kernel = functools.partial(
            _decoder_kernel, n_layers=n_layers, N=N, H=H, W=W,
            cpads=cpads, acts=acts)

        y2d = pl.pallas_call(
            kernel,
            out_shape=out_shape,
            grid=(1,),
            in_specs=in_specs,
            out_specs=out_spec,
            scratch_shapes=scratch_shapes,
            compiler_params=pltpu.CompilerParams(
                dimension_semantics=("arbitrary",)),
        )(*flat_inputs)

        # strip channel padding, back to NCHW (wrapper glue)
        cout = self.params[-1][0].shape[-1]
        y = y2d.reshape(N, H, W, cpads[-1])[..., :cout]
        return jnp.transpose(y, (0, 3, 1, 2))


# ----------------------------------------------------------------------------
# Parameter init + pure-JAX reference
# ----------------------------------------------------------------------------
def init_conv_params(key, cin, cout, ksize=3, dtype=jnp.float32):
    """PyTorch-style uniform(-1/sqrt(fan_in), 1/sqrt(fan_in)) init, HWIO."""
    kw_key, kb_key = jax.random.split(key)
    fan_in = cin * ksize * ksize
    bound = 1.0 / jnp.sqrt(jnp.float32(fan_in))
    w = jax.random.uniform(kw_key, (ksize, ksize, cin, cout), dtype,
                           minval=-bound, maxval=bound)
    b = jax.random.uniform(kb_key, (cout,), dtype, minval=-bound, maxval=bound)
    return w, b


def reference_decoder(x_nchw, params, out):
    """Pure-JAX (lax.conv, f32) reference for correctness checking."""
    x = x_nchw
    n_layers = len(params)
    for i, (w, b, act) in enumerate(params):
        y = jax.lax.conv_general_dilated(
            x, w, window_strides=(1, 1), padding="SAME",
            dimension_numbers=("NCHW", "HWIO", "NCHW"))
        y = y + b[None, :, None, None]
        activation = out if i == n_layers - 1 else act
        if activation == "relu":
            y = jnp.maximum(y, 0.0)
        elif activation == "sigmoid":
            y = jax.nn.sigmoid(y)
        elif activation == "tanh":
            y = jnp.tanh(y)
        x = y
    return x


if __name__ == "__main__":
    key = jax.random.PRNGKey(0)
    k_in, k0, k1, k2 = jax.random.split(key, 4)

    # Small shapes: batch=2, in_channels=4, spatial=16x16.
    x = jax.random.normal(k_in, (2, 4, 16, 16), jnp.float32)

    # layers: Conv(4->8)+ReLU, Conv(8->8)+ReLU, Conv(8->3); out = sigmoid.
    w0, b0 = init_conv_params(k0, 4, 8)
    w1, b1 = init_conv_params(k1, 8, 8)
    w2, b2 = init_conv_params(k2, 8, 3)
    params = [(w0, b0, "relu"), (w1, b1, "relu"), (w2, b2, "none")]

    decoder = PallasDecoder(params, out="sigmoid")
    y = decoder(x)
    y = jax.block_until_ready(y)

    # Sanity check against a pure-JAX f32 reference (bf16 MXU operands =>
    # relaxed tolerance, per performance review).
    y_ref = jax.block_until_ready(reference_decoder(x, params, "sigmoid"))
    assert y.shape == (2, 3, 16, 16)
    max_err = float(jnp.max(jnp.abs(y - y_ref)))
    assert jnp.allclose(y, y_ref, atol=2e-2, rtol=2e-2), (
        f"mismatch vs reference, max abs err = {max_err}")

    print("KERNEL_OK")
</pallas_src>

<mosaic_0001>
module attributes {stable_mosaic.version = 11 : i64} {
  func.func @_decoder_kernel(%arg0: i32, %arg1: memref<36x128xbf16, #tpu.memory_space<vmem>>, %arg2: memref<3x128x128xbf16, #tpu.memory_space<vmem>>, %arg3: memref<1x128xf32, #tpu.memory_space<vmem>>, %arg4: memref<3x128x128xbf16, #tpu.memory_space<vmem>>, %arg5: memref<1x128xf32, #tpu.memory_space<vmem>>, %arg6: memref<3x128x128xbf16, #tpu.memory_space<vmem>>, %arg7: memref<1x128xf32, #tpu.memory_space<vmem>>, %arg8: memref<32x128xf32, #tpu.memory_space<vmem>>, %arg9: memref<36x128xbf16, #tpu.memory_space<vmem>>, %arg10: memref<36x128xbf16, #tpu.memory_space<vmem>>) attributes {dimension_semantics = [#tpu.dimension_semantics<arbitrary>], iteration_bounds = array<i64: 1>, scalar_prefetch = 0 : i64, scratch_operands = 2 : i64, tpu.core_type = #tpu.core_type<tc>, window_params = [{pipeline_mode = #tpu.pipeline_mode<synchronous>, transform_indices = @transform_0, window_bounds = array<i64: 36, 128>}, {pipeline_mode = #tpu.pipeline_mode<synchronous>, transform_indices = @transform_1, window_bounds = array<i64: 3, 128, 128>}, {pipeline_mode = #tpu.pipeline_mode<synchronous>, transform_indices = @transform_2, window_bounds = array<i64: 1, 128>}, {pipeline_mode = #tpu.pipeline_mode<synchronous>, transform_indices = @transform_3, window_bounds = array<i64: 3, 128, 128>}, {pipeline_mode = #tpu.pipeline_mode<synchronous>, transform_indices = @transform_4, window_bounds = array<i64: 1, 128>}, {pipeline_mode = #tpu.pipeline_mode<synchronous>, transform_indices = @transform_5, window_bounds = array<i64: 3, 128, 128>}, {pipeline_mode = #tpu.pipeline_mode<synchronous>, transform_indices = @transform_6, window_bounds = array<i64: 1, 128>}, {pipeline_mode = #tpu.pipeline_mode<synchronous>, transform_indices = @transform_7, window_bounds = array<i64: 32, 128>}]} {
    %c0 = arith.constant 0 : index
    %c0_0 = arith.constant 0 : index
    %0 = vector.load %arg1[%c0, %c0_0] : memref<36x128xbf16, #tpu.memory_space<vmem>>, vector<34x128xbf16>
    %c0_1 = arith.constant 0 : index
    %c0_2 = arith.constant 0 : index
    %c0_3 = arith.constant 0 : index
    %1 = vector.load %arg2[%c0_1, %c0_2, %c0_3] : memref<3x128x128xbf16, #tpu.memory_space<vmem>>, vector<1x128x128xbf16>
    %2 = vector.shape_cast %1 : vector<1x128x128xbf16> to vector<128x128xbf16>
    %cst = arith.constant dense<0.000000e+00> : vector<34x128xf32>
    %3 = tpu.matmul %0, %2, %cst {dimension_numbers = #tpu.dot_dimension_numbers<[1], [0], [0], [1], [0, 0, 1, 1], [], []>} : vector<34x128xbf16>, vector<128x128xbf16>, vector<34x128xf32> -> vector<34x128xf32>
    %c1 = arith.constant 1 : index
    %c0_4 = arith.constant 0 : index
    %4 = vector.load %arg1[%c1, %c0_4] : memref<36x128xbf16, #tpu.memory_space<vmem>>, vector<34x128xbf16>
    %c1_5 = arith.constant 1 : index
    %c0_6 = arith.constant 0 : index
    %c0_7 = arith.constant 0 : index
    %5 = vector.load %arg2[%c1_5, %c0_6, %c0_7] : memref<3x128x128xbf16, #tpu.memory_space<vmem>>, vector<1x128x128xbf16>
    %6 = vector.shape_cast %5 : vector<1x128x128xbf16> to vector<128x128xbf16>
    %cst_8 = arith.constant dense<0.000000e+00> : vector<34x128xf32>
    %7 = tpu.matmul %4, %6, %cst_8 {dimension_numbers = #tpu.dot_dimension_numbers<[1], [0], [0], [1], [0, 0, 1, 1], [], []>} : vector<34x128xbf16>, vector<128x128xbf16>, vector<34x128xf32> -> vector<34x128xf32>
    %8 = arith.addf %3, %7 : vector<34x128xf32>
    %c2 = arith.constant 2 : index
    %c0_9 = arith.constant 0 : index
    %9 = vector.load %arg1[%c2, %c0_9] : memref<36x128xbf16, #tpu.memory_space<vmem>>, vector<34x128xbf16>
    %c2_10 = arith.constant 2 : index
    %c0_11 = arith.constant 0 : index
    %c0_12 = arith.constant 0 : index
    %10 = vector.load %arg2[%c2_10, %c0_11, %c0_12] : memref<3x128x128xbf16, #tpu.memory_space<vmem>>, vector<1x128x128xbf16>
    %11 = vector.shape_cast %10 : vector<1x128x128xbf16> to vector<128x128xbf16>
    %cst_13 = arith.constant dense<0.000000e+00> : vector<34x128xf32>
    %12 = tpu.matmul %9, %11, %cst_13 {dimension_numbers = #tpu.dot_dimension_numbers<[1], [0], [0], [1], [0, 0, 1, 1], [], []>} : vector<34x128xbf16>, vector<128x128xbf16>, vector<34x128xf32> -> vector<34x128xf32>
    %13 = arith.addf %8, %12 : vector<34x128xf32>
    %c0_14 = arith.constant 0 : index
    %c0_15 = arith.constant 0 : index
    %14 = vector.load %arg3[%c0_14, %c0_15] : memref<1x128xf32, #tpu.memory_space<vmem>>, vector<1x128xf32>
    %15 = vector.broadcast %14 : vector<1x128xf32> to vector<34x128xf32>
    %16 = arith.addf %13, %15 : vector<34x128xf32>
    %cst_16 = arith.constant 0.000000e+00 : f32
    %17 = vector.broadcast %cst_16 : f32 to vector<34x128xf32>
    %18 = arith.maximumf %16, %17 : vector<34x128xf32>
    %cst_17 = arith.constant 0.000000e+00 : bf16
    %19 = vector.broadcast %cst_17 : bf16 to vector<1x128xbf16>
    %c0_18 = arith.constant 0 : index
    %c0_19 = arith.constant 0 : index
    %20 = vector.load %arg9[%c0_18, %c0_19] : memref<36x128xbf16, #tpu.memory_space<vmem>>, vector<1x128xbf16>
    tpu.vector_store %arg9[%c0_18, %c0_19], %19 {strides = array<i32>} : memref<36x128xbf16, #tpu.memory_space<vmem>>, vector<1x128xbf16>,
    %c17 = arith.constant 17 : index
    %c0_20 = arith.constant 0 : index
    %21 = vector.load %arg9[%c17, %c0_20] : memref<36x128xbf16, #tpu.memory_space<vmem>>, vector<1x128xbf16>
    tpu.vector_store %arg9[%c17, %c0_20], %19 {strides = array<i32>} : memref<36x128xbf16, #tpu.memory_space<vmem>>, vector<1x128xbf16>,
    %22 = vector.extract_strided_slice %18 {offsets = [0, 0], sizes = [16, 128], strides = [1, 1]} : vector<34x128xf32> to vector<16x128xf32>
    %23 = arith.truncf %22 : vector<16x128xf32> to vector<16x128xbf16>
    %c1_21 = arith.constant 1 : index
    %c0_22 = arith.constant 0 : index
    %24 = vector.load %arg9[%c1_21, %c0_22] : memref<36x128xbf16, #tpu.memory_space<vmem>>, vector<16x128xbf16>
    tpu.vector_store %arg9[%c1_21, %c0_22], %23 {strides = array<i32>} : memref<36x128xbf16, #tpu.memory_space<vmem>>, vector<16x128xbf16>,
    %c18 = arith.constant 18 : index
    %c0_23 = arith.constant 0 : index
    %25 = vector.load %arg9[%c18, %c0_23] : memref<36x128xbf16, #tpu.memory_space<vmem>>, vector<1x128xbf16>
    tpu.vector_store %arg9[%c18, %c0_23], %19 {strides = array<i32>} : memref<36x128xbf16, #tpu.memory_space<vmem>>, vector<1x128xbf16>,
    %c35 = arith.constant 35 : index
    %c0_24 = arith.constant 0 : index
    %26 = vector.load %arg9[%c35, %c0_24] : memref<36x128xbf16, #tpu.memory_space<vmem>>, vector<1x128xbf16>
    tpu.vector_store %arg9[%c35, %c0_24], %19 {strides = array<i32>} : memref<36x128xbf16, #tpu.memory_space<vmem>>, vector<1x128xbf16>,
    %27 = vector.extract_strided_slice %18 {offsets = [18, 0], sizes = [16, 128], strides = [1, 1]} : vector<34x128xf32> to vector<16x128xf32>
    %28 = arith.truncf %27 : vector<16x128xf32> to vector<16x128xbf16>
    %c19 = arith.constant 19 : index
    %c0_25 = arith.constant 0 : index
    %29 = vector.load %arg9[%c19, %c0_25] : memref<36x128xbf16, #tpu.memory_space<vmem>>, vector<16x128xbf16>
    tpu.vector_store %arg9[%c19, %c0_25], %28 {strides = array<i32>} : memref<36x128xbf16, #tpu.memory_space<vmem>>, vector<16x128xbf16>,
    %c0_26 = arith.constant 0 : index
    %c0_27 = arith.constant 0 : index
    %30 = vector.load %arg9[%c0_26, %c0_27] : memref<36x128xbf16, #tpu.memory_space<vmem>>, vector<34x128xbf16>
    %c0_28 = arith.constant 0 : index
    %c0_29 = arith.constant 0 : index
    %c0_30 = arith.constant 0 : index
    %31 = vector.load %arg4[%c0_28, %c0_29, %c0_30] : memref<3x128x128xbf16, #tpu.memory_space<vmem>>, vector<1x128x128xbf16>
    %32 = vector.shape_cast %31 : vector<1x128x128xbf16> to vector<128x128xbf16>
    %cst_31 = arith.constant dense<0.000000e+00> : vector<34x128xf32>
    %33 = tpu.matmul %30, %32, %cst_31 {dimension_numbers = #tpu.dot_dimension_numbers<[1], [0], [0], [1], [0, 0, 1, 1], [], []>} : vector<34x128xbf16>, vector<128x128xbf16>, vector<34x128xf32> -> vector<34x128xf32>
    %c1_32 = arith.constant 1 : index
    %c0_33 = arith.constant 0 : index
    %34 = vector.load %arg9[%c1_32, %c0_33] : memref<36x128xbf16, #tpu.memory_space<vmem>>, vector<34x128xbf16>
    %c1_34 = arith.constant 1 : index
    %c0_35 = arith.constant 0 : index
    %c0_36 = arith.constant 0 : index
    %35 = vector.load %arg4[%c1_34, %c0_35, %c0_36] : memref<3x128x128xbf16, #tpu.memory_space<vmem>>, vector<1x128x128xbf16>
    %36 = vector.shape_cast %35 : vector<1x128x128xbf16> to vector<128x128xbf16>
    %cst_37 = arith.constant dense<0.000000e+00> : vector<34x128xf32>
    %37 = tpu.matmul %34, %36, %cst_37 {dimension_numbers = #tpu.dot_dimension_numbers<[1], [0], [0], [1], [0, 0, 1, 1], [], []>} : vector<34x128xbf16>, vector<128x128xbf16>, vector<34x128xf32> -> vector<34x128xf32>
    %38 = arith.addf %33, %37 : vector<34x128xf32>
    %c2_38 = arith.constant 2 : index
    %c0_39 = arith.constant 0 : index
    %39 = vector.load %arg9[%c2_38, %c0_39] : memref<36x128xbf16, #tpu.memory_space<vmem>>, vector<34x128xbf16>
    %c2_40 = arith.constant 2 : index
    %c0_41 = arith.constant 0 : index
    %c0_42 = arith.constant 0 : index
    %40 = vector.load %arg4[%c2_40, %c0_41, %c0_42] : memref<3x128x128xbf16, #tpu.memory_space<vmem>>, vector<1x128x128xbf16>
    %41 = vector.shape_cast %40 : vector<1x128x128xbf16> to vector<128x128xbf16>
    %cst_43 = arith.constant dense<0.000000e+00> : vector<34x128xf32>
    %42 = tpu.matmul %39, %41, %cst_43 {dimension_numbers = #tpu.dot_dimension_numbers<[1], [0], [0], [1], [0, 0, 1, 1], [], []>} : vector<34x128xbf16>, vector<128x128xbf16>, vector<34x128xf32> -> vector<34x128xf32>
    %43 = arith.addf %38, %42 : vector<34x128xf32>
    %c0_44 = arith.constant 0 : index
    %c0_45 = arith.constant 0 : index
    %44 = vector.load %arg5[%c0_44, %c0_45] : memref<1x128xf32, #tpu.memory_space<vmem>>, vector<1x128xf32>
    %45 = vector.broadcast %44 : vector<1x128xf32> to vector<34x128xf32>
    %46 = arith.addf %43, %45 : vector<34x128xf32>
    %cst_46 = arith.constant 0.000000e+00 : f32
    %47 = vector.broadcast %cst_46 : f32 to vector<34x128xf32>
    %48 = arith.maximumf %46, %47 : vector<34x128xf32>
    %cst_47 = arith.constant 0.000000e+00 : bf16
    %49 = vector.broadcast %cst_47 : bf16 to vector<1x128xbf16>
    %c0_48 = arith.constant 0 : index
    %c0_49 = arith.constant 0 : index
    %50 = vector.load %arg10[%c0_48, %c0_49] : memref<36x128xbf16, #tpu.memory_space<vmem>>, vector<1x128xbf16>
    tpu.vector_store %arg10[%c0_48, %c0_49], %49 {strides = array<i32>} : memref<36x128xbf16, #tpu.memory_space<vmem>>, vector<1x128xbf16>,
    %c17_50 = arith.constant 17 : index
    %c0_51 = arith.constant 0 : index
    %51 = vector.load %arg10[%c17_50, %c0_51] : memref<36x128xbf16, #tpu.memory_space<vmem>>, vector<1x128xbf16>
    tpu.vector_store %arg10[%c17_50, %c0_51], %49 {strides = array<i32>} : memref<36x128xbf16, #tpu.memory_space<vmem>>, vector<1x128xbf16>,
    %52 = vector.extract_strided_slice %48 {offsets = [0, 0], sizes = [16, 128], strides = [1, 1]} : vector<34x128xf32> to vector<16x128xf32>
    %53 = arith.truncf %52 : vector<16x128xf32> to vector<16x128xbf16>
    %c1_52 = arith.constant 1 : index
    %c0_53 = arith.constant 0 : index
    %54 = vector.load %arg10[%c1_52, %c0_53] : memref<36x128xbf16, #tpu.memory_space<vmem>>, vector<16x128xbf16>
    tpu.vector_store %arg10[%c1_52, %c0_53], %53 {strides = array<i32>} : memref<36x128xbf16, #tpu.memory_space<vmem>>, vector<16x128xbf16>,
    %c18_54 = arith.constant 18 : index
    %c0_55 = arith.constant 0 : index
    %55 = vector.load %arg10[%c18_54, %c0_55] : memref<36x128xbf16, #tpu.memory_space<vmem>>, vector<1x128xbf16>
    tpu.vector_store %arg10[%c18_54, %c0_55], %49 {strides = array<i32>} : memref<36x128xbf16, #tpu.memory_space<vmem>>, vector<1x128xbf16>,
    %c35_56 = arith.constant 35 : index
    %c0_57 = arith.constant 0 : index
    %56 = vector.load %arg10[%c35_56, %c0_57] : memref<36x128xbf16, #tpu.memory_space<vmem>>, vector<1x128xbf16>
    tpu.vector_store %arg10[%c35_56, %c0_57], %49 {strides = array<i32>} : memref<36x128xbf16, #tpu.memory_space<vmem>>, vector<1x128xbf16>,
    %57 = vector.extract_strided_slice %48 {offsets = [18, 0], sizes = [16, 128], strides = [1, 1]} : vector<34x128xf32> to vector<16x128xf32>
    %58 = arith.truncf %57 : vector<16x128xf32> to vector<16x128xbf16>
    %c19_58 = arith.constant 19 : index
    %c0_59 = arith.constant 0 : index
    %59 = vector.load %arg10[%c19_58, %c0_59] : memref<36x128xbf16, #tpu.memory_space<vmem>>, vector<16x128xbf16>
    tpu.vector_store %arg10[%c19_58, %c0_59], %58 {strides = array<i32>} : memref<36x128xbf16, #tpu.memory_space<vmem>>, vector<16x128xbf16>,
    %c0_60 = arith.constant 0 : index
    %c0_61 = arith.constant 0 : index
    %60 = vector.load %arg10[%c0_60, %c0_61] : memref<36x128xbf16, #tpu.memory_space<vmem>>, vector<34x128xbf16>
    %c0_62 = arith.constant 0 : index
    %c0_63 = arith.constant 0 : index
    %c0_64 = arith.constant 0 : index
    %61 = vector.load %arg6[%c0_62, %c0_63, %c0_64] : memref<3x128x128xbf16, #tpu.memory_space<vmem>>, vector<1x128x128xbf16>
    %62 = vector.shape_cast %61 : vector<1x128x128xbf16> to vector<128x128xbf16>
    %cst_65 = arith.constant dense<0.000000e+00> : vector<34x128xf32>
    %63 = tpu.matmul %60, %62, %cst_65 {dimension_numbers = #tpu.dot_dimension_numbers<[1], [0], [0], [1], [0, 0, 1, 1], [], []>} : vector<34x128xbf16>, vector<128x128xbf16>, vector<34x128xf32> -> vector<34x128xf32>
    %c1_66 = arith.constant 1 : index
    %c0_67 = arith.constant 0 : index
    %64 = vector.load %arg10[%c1_66, %c0_67] : memref<36x128xbf16, #tpu.memory_space<vmem>>, vector<34x128xbf16>
    %c1_68 = arith.constant 1 : index
    %c0_69 = arith.constant 0 : index
    %c0_70 = arith.constant 0 : index
    %65 = vector.load %arg6[%c1_68, %c0_69, %c0_70] : memref<3x128x128xbf16, #tpu.memory_space<vmem>>, vector<1x128x128xbf16>
    %66 = vector.shape_cast %65 : vector<1x128x128xbf16> to vector<128x128xbf16>
    %cst_71 = arith.constant dense<0.000000e+00> : vector<34x128xf32>
    %67 = tpu.matmul %64, %66, %cst_71 {dimension_numbers = #tpu.dot_dimension_numbers<[1], [0], [0], [1], [0, 0, 1, 1], [], []>} : vector<34x128xbf16>, vector<128x128xbf16>, vector<34x128xf32> -> vector<34x128xf32>
    %68 = arith.addf %63, %67 : vector<34x128xf32>
    %c2_72 = arith.constant 2 : index
    %c0_73 = arith.constant 0 : index
    %69 = vector.load %arg10[%c2_72, %c0_73] : memref<36x128xbf16, #tpu.memory_space<vmem>>, vector<34x128xbf16>
    %c2_74 = arith.constant 2 : index
    %c0_75 = arith.constant 0 : index
    %c0_76 = arith.constant 0 : index
    %70 = vector.load %arg6[%c2_74, %c0_75, %c0_76] : memref<3x128x128xbf16, #tpu.memory_space<vmem>>, vector<1x128x128xbf16>
    %71 = vector.shape_cast %70 : vector<1x128x128xbf16> to vector<128x128xbf16>
    %cst_77 = arith.constant dense<0.000000e+00> : vector<34x128xf32>
    %72 = tpu.matmul %69, %71, %cst_77 {dimension_numbers = #tpu.dot_dimension_numbers<[1], [0], [0], [1], [0, 0, 1, 1], [], []>} : vector<34x128xbf16>, vector<128x128xbf16>, vector<34x128xf32> -> vector<34x128xf32>
    %73 = arith.addf %68, %72 : vector<34x128xf32>
    %c0_78 = arith.constant 0 : index
    %c0_79 = arith.constant 0 : index
    %74 = vector.load %arg7[%c0_78, %c0_79] : memref<1x128xf32, #tpu.memory_space<vmem>>, vector<1x128xf32>
    %75 = vector.broadcast %74 : vector<1x128xf32> to vector<34x128xf32>
    %76 = arith.addf %73, %75 : vector<34x128xf32>
    %77 = arith.negf %76 : vector<34x128xf32>
    %78 = math.exp %77 : vector<34x128xf32>
    %cst_80 = arith.constant 1.000000e+00 : f32
    %79 = vector.broadcast %cst_80 : f32 to vector<34x128xf32>
    %80 = arith.addf %79, %78 : vector<34x128xf32>
    %81 = arith.divf %79, %80 : vector<34x128xf32>
    %82 = vector.extract_strided_slice %81 {offsets = [0, 0], sizes = [16, 128], strides = [1, 1]} : vector<34x128xf32> to vector<16x128xf32>
    %c0_81 = arith.constant 0 : index
    %c0_82 = arith.constant 0 : index
    %83 = vector.load %arg8[%c0_81, %c0_82] : memref<32x128xf32, #tpu.memory_space<vmem>>, vector<16x128xf32>
    tpu.vector_store %arg8[%c0_81, %c0_82], %82 {strides = array<i32>} : memref<32x128xf32, #tpu.memory_space<vmem>>, vector<16x128xf32>,
    %84 = vector.extract_strided_slice %81 {offsets = [18, 0], sizes = [16, 128], strides = [1, 1]} : vector<34x128xf32> to vector<16x128xf32>
    %c16 = arith.constant 16 : index
    %c0_83 = arith.constant 0 : index
    %85 = vector.load %arg8[%c16, %c0_83] : memref<32x128xf32, #tpu.memory_space<vmem>>, vector<16x128xf32>
    tpu.vector_store %arg8[%c16, %c0_83], %84 {strides = array<i32>} : memref<32x128xf32, #tpu.memory_space<vmem>>, vector<16x128xf32>,
    return
  }
  func.func @transform_0(%arg0: i32) -> (i32, i32) {
    %c0_i32 = arith.constant 0 : i32
    %c0_i32_0 = arith.constant 0 : i32
    %c0_i32_1 = arith.constant 0 : i32
    return %c0_i32, %c0_i32_0 : i32, i32
  }
  func.func @transform_1(%arg0: i32) -> (i32, i32, i32) {
    %c0_i32 = arith.constant 0 : i32
    %c0_i32_0 = arith.constant 0 : i32
    %c0_i32_1 = arith.constant 0 : i32
    %c0_i32_2 = arith.constant 0 : i32
    return %c0_i32, %c0_i32_0, %c0_i32_1 : i32, i32, i32
  }
  func.func @transform_2(%arg0: i32) -> (i32, i32) {
    %c0_i32 = arith.constant 0 : i32
    %c0_i32_0 = arith.constant 0 : i32
    %c0_i32_1 = arith.constant 0 : i32
    return %c0_i32, %c0_i32_0 : i32, i32
  }
  func.func @transform_3(%arg0: i32) -> (i32, i32, i32) {
    %c0_i32 = arith.constant 0 : i32
    %c0_i32_0 = arith.constant 0 : i32
    %c0_i32_1 = arith.constant 0 : i32
    %c0_i32_2 = arith.constant 0 : i32
    return %c0_i32, %c0_i32_0, %c0_i32_1 : i32, i32, i32
  }
  func.func @transform_4(%arg0: i32) -> (i32, i32) {
    %c0_i32 = arith.constant 0 : i32
    %c0_i32_0 = arith.constant 0 : i32
    %c0_i32_1 = arith.constant 0 : i32
    return %c0_i32, %c0_i32_0 : i32, i32
  }
  func.func @transform_5(%arg0: i32) -> (i32, i32, i32) {
    %c0_i32 = arith.constant 0 : i32
    %c0_i32_0 = arith.constant 0 : i32
    %c0_i32_1 = arith.constant 0 : i32
    %c0_i32_2 = arith.constant 0 : i32
    return %c0_i32, %c0_i32_0, %c0_i32_1 : i32, i32, i32
  }
  func.func @transform_6(%arg0: i32) -> (i32, i32) {
    %c0_i32 = arith.constant 0 : i32
    %c0_i32_0 = arith.constant 0 : i32
    %c0_i32_1 = arith.constant 0 : i32
    return %c0_i32, %c0_i32_0 : i32, i32
  }
  func.func @transform_7(%arg0: i32) -> (i32, i32) {
    %c0_i32 = arith.constant 0 : i32
    %c0_i32_0 = arith.constant 0 : i32
    %c0_i32_1 = arith.constant 0 : i32
    return %c0_i32, %c0_i32_0 : i32, i32
  }
}

</mosaic_0001>

<llo_original>
// kernel: tpu_custom_call.1
$region0: #{tpu_custom_call.1}
  #allocation0 [shape = 'u32[]', space=smem, size = 0x4, offset = 0x4, fixed_abs, tag = 'smem constant byte address 0x4 - core index']
  #allocation1 [shape = 'u32[144,128]{1,0:T(1,128)}', space=vmem, size = 0x12000, scoped, tag = 'internal scratch']
  #allocation2 [shape = 'bf16[36,128]{1,0:T(8,128)(2,1)}', space=vmem, size = 0x2800, scoped, tag = 'scratch operand']
  #allocation3 [shape = 'bf16[36,128]{1,0:T(8,128)(2,1)}', space=vmem, size = 0x2800, scoped, tag = 'scratch operand']
  %s0 = inlined_call_operand.hbm [shape: bf16[36,128], index: 0, kind: input, shape index: {}]
  %s1 = inlined_call_operand.hbm [shape: bf16[3,128,128], index: 1, kind: input, shape index: {}]
  %s2 = inlined_call_operand.vmem [shape: f32[1,128], index: 2, kind: input, shape index: {}]
  %s3 = inlined_call_operand.hbm [shape: bf16[3,128,128], index: 3, kind: input, shape index: {}]
  %s4 = inlined_call_operand.vmem [shape: f32[1,128], index: 4, kind: input, shape index: {}]
  %s5 = inlined_call_operand.hbm [shape: bf16[3,128,128], index: 5, kind: input, shape index: {}]
  %s6 = inlined_call_operand.vmem [shape: f32[1,128], index: 6, kind: input, shape index: {}]
  %s7 = inlined_call_operand.hbm [shape: f32[32,128], index: 7, kind: output, shape index: {}]
  %s8 = sld [smem:[#allocation0]]
  $region54: #{tpu_custom_call.1} parent=0
    _
  %s10 = ssub.s32 1, %s8
  %s11 = scalar_select 0, %s10, %s8
  $region1: #{tpu_custom_call.1} parent=0
    #allocation4 [shape = 'u8[10240]{0}', space=vmem, size = 0x2800, scoped, tag = 'input window, operand 0, single buffered']
    #allocation5 [shape = 's32[1]{0}', space=sflag, size = 0x4, scoped, tag = 'scoped memory for tpu_custom_call.1']
    #allocation6 [shape = 's32[1]{0}', space=sflag, size = 0x4, scoped, tag = 'scoped memory for tpu_custom_call.1']
    #allocation7 [shape = 'u8[98304]{0}', space=vmem, size = 0x18000, scoped, tag = 'input window, operand 1, single buffered']
    #allocation8 [shape = 's32[1]{0}', space=sflag, size = 0x4, scoped, tag = 'scoped memory for tpu_custom_call.1']
    #allocation9 [shape = 'u8[98304]{0}', space=vmem, size = 0x18000, scoped, tag = 'input window, operand 3, single buffered']
    #allocation10 [shape = 'u8[98304]{0}', space=vmem, size = 0x18000, scoped, tag = 'input window, operand 5, single buffered']
    #allocation11 [shape = 's32[1]{0}', space=sflag, size = 0x4, scoped, tag = 'scoped memory for tpu_custom_call.1']
    #allocation12 [shape = 'u8[16384]{0}', space=vmem, size = 0x4000, scoped, tag = 'output window, operand 0, single buffered']
    %12 = vsyncpa [#allocation5], 0
    %13 = vsyncpa [#allocation8], 0
    %14 = vsyncpa [#allocation11], 0
    %15 = vsyncpa [#allocation6], 0
    // Predicated region
    $region2: #{tpu_custom_call.1} parent=1 // pred_check
      _
    $region3: #{tpu_custom_call.1} parent=1 // pred_check_branch
      %17 = sbr.rel (0) target = $region5
    $region4: #{tpu_custom_call.1} parent=1 // pred_region
      %s19 = ssub.s32 320, 320
      %20 = vsyncadd [#allocation5], %s19
      %s21 = sshll.u32 [#allocation4], 4
      %s22 = int_to_ptr.vmem [resolvable:$true] %s21
      %27 = dma.hbm_to_vmem [thread:$0]  %s0, 320, %s22, [#allocation5], 64, 64, 4
    $region5: #{tpu_custom_call.1} parent=1 // pred_fallthru
      _
    // Predicated region
    $region6: #{tpu_custom_call.1} parent=1 // pred_check
      _
    $region7: #{tpu_custom_call.1} parent=1 // pred_check_branch
      %29 = sbr.rel (0) target = $region9
    $region8: #{tpu_custom_call.1} parent=1 // pred_region
      %s31 = ssub.s32 3072, 3072
      %32 = vsyncadd [#allocation8], %s31
      %s33 = sshll.u32 [#allocation7], 4
      %s34 = int_to_ptr.vmem [resolvable:$true] %s33
      %39 = dma.hbm_to_vmem [thread:$0]  %s1, 3072, %s34, [#allocation8], 64, 64, 4
    $region9: #{tpu_custom_call.1} parent=1 // pred_fallthru
      _
    // Predicated region
    $region10: #{tpu_custom_call.1} parent=1 // pred_check
      _
    $region11: #{tpu_custom_call.1} parent=1 // pred_check_branch
      %41 = sbr.rel (0) target = $region13
    $region12: #{tpu_custom_call.1} parent=1 // pred_region
      _
    $region13: #{tpu_custom_call.1} parent=1 // pred_fallthru
      _
    // Predicated region
    $region14: #{tpu_custom_call.1} parent=1 // pred_check
      _
    $region15: #{tpu_custom_call.1} parent=1 // pred_check_branch
      %43 = sbr.rel (0) target = $region17
    $region16: #{tpu_custom_call.1} parent=1 // pred_region
      %s45 = ssub.s32 3072, 3072
      %46 = vsyncadd [#allocation8], %s45
      %s47 = sshll.u32 [#allocation9], 4
      %s48 = int_to_ptr.vmem [resolvable:$true] %s47
      %53 = dma.hbm_to_vmem [thread:$0]  %s3, 3072, %s48, [#allocation8], 64, 64, 4
    $region17: #{tpu_custom_call.1} parent=1 // pred_fallthru
      _
    // Predicated region
    $region18: #{tpu_custom_call.1} parent=1 // pred_check
      _
    $region19: #{tpu_custom_call.1} parent=1 // pred_check_branch
      %55 = sbr.rel (0) target = $region21
    $region20: #{tpu_custom_call.1} parent=1 // pred_region
      _
    $region21: #{tpu_custom_call.1} parent=1 // pred_fallthru
      _
    // Predicated region
    $region22: #{tpu_custom_call.1} parent=1 // pred_check
      _
    $region23: #{tpu_custom_call.1} parent=1 // pred_check_branch
      %57 = sbr.rel (0) target = $region25
    $region24: #{tpu_custom_call.1} parent=1 // pred_region
      %s59 = ssub.s32 3072, 3072
      %60 = vsyncadd [#allocation11], %s59
      %s61 = sshll.u32 [#allocation10], 4
      %s62 = int_to_ptr.vmem [resolvable:$true] %s61
      %67 = dma.hbm_to_vmem [thread:$0]  %s5, 3072, %s62, [#allocation11], 64, 64, 4
    $region25: #{tpu_custom_call.1} parent=1 // pred_fallthru
      _
    // Predicated region
    $region26: #{tpu_custom_call.1} parent=1 // pred_check
      _
    $region27: #{tpu_custom_call.1} parent=1 // pred_check_branch
      %69 = sbr.rel (0) target = $region29
    $region28: #{tpu_custom_call.1} parent=1 // pred_region
      _
    $region29: #{tpu_custom_call.1} parent=1 // pred_fallthru
      _
    // Predicated region
    $region30: #{tpu_custom_call.1} parent=1 // pred_check
      _
    $region31: #{tpu_custom_call.1} parent=1 // pred_check_branch
      %71 = sbr.rel (0) target = $region33
    $region32: #{tpu_custom_call.1} parent=1 // pred_region
      %72 = dma.done [#allocation5], 320
    $region33: #{tpu_custom_call.1} parent=1 // pred_fallthru
      _
    // Predicated region
    $region34: #{tpu_custom_call.1} parent=1 // pred_check
      _
    $region35: #{tpu_custom_call.1} parent=1 // pred_check_branch
      %74 = sbr.rel (0) target = $region37
    $region36: #{tpu_custom_call.1} parent=1 // pred_region
      %75 = dma.done [#allocation8], 3072
    $region37: #{tpu_custom_call.1} parent=1 // pred_fallthru
      _
    // Predicated region
    $region38: #{tpu_custom_call.1} parent=1 // pred_check
      _
    $region39: #{tpu_custom_call.1} parent=1 // pred_check_branch
      %77 = sbr.rel (0) target = $region41
    $region40: #{tpu_custom_call.1} parent=1 // pred_region
      %78 = dma.done [#allocation8], 3072
    $region41: #{tpu_custom_call.1} parent=1 // pred_fallthru
      _
    // Predicated region
    $region42: #{tpu_custom_call.1} parent=1 // pred_check
      _
    $region43: #{tpu_custom_call.1} parent=1 // pred_check_branch
      %80 = sbr.rel (0) target = $region45
    $region44: #{tpu_custom_call.1} parent=1 // pred_region
      %81 = dma.done [#allocation11], 3072
    $region45: #{tpu_custom_call.1} parent=1 // pred_fallthru
      _
    %v83 = vld [vmem:[#allocation4] sm:$0xf]
    %v84 = vld [vmem:[#allocation4 + $0x4] sm:$0xf]
    %v85 = vld [vmem:[#allocation4 + $0x8] sm:$0xf]
    %v86 = vld [vmem:[#allocation4 + $0xc] sm:$0xf]
    %v87 = vld [vmem:[#allocation4 + $0x10] sm:$0x1]
    %v88 = vld [vmem:[#allocation7] sm:$0xf]
    %v89 = vld [vmem:[#allocation7 + $0x4] sm:$0xf]
    %v90 = vld [vmem:[#allocation7 + $0x8] sm:$0xf]
    %v91 = vld [vmem:[#allocation7 + $0xc] sm:$0xf]
    %v92 = vld [vmem:[#allocation7 + $0x10] sm:$0xf]
    %v93 = vld [vmem:[#allocation7 + $0x14] sm:$0xf]
    %v94 = vld [vmem:[#allocation7 + $0x18] sm:$0xf]
    %v95 = vld [vmem:[#allocation7 + $0x1c] sm:$0xf]
    %v96 = vld [vmem:[#allocation7 + $0x20] sm:$0xf]
    %v97 = vld [vmem:[#allocation7 + $0x24] sm:$0xf]
    %v98 = vld [vmem:[#allocation7 + $0x28] sm:$0xf]
    %v99 = vld [vmem:[#allocation7 + $0x2c] sm:$0xf]
    %v100 = vld [vmem:[#allocation7 + $0x30] sm:$0xf]
    %v101 = vld [vmem:[#allocation7 + $0x34] sm:$0xf]
    %v102 = vld [vmem:[#allocation7 + $0x38] sm:$0xf]
    %v103 = vld [vmem:[#allocation7 + $0x3c] sm:$0xf]
    %v104 = vld [vmem:[#allocation4 + $0x10] sm:$0x3]
    %s105 = scalar_lea.vmem [#allocation7], 64
    %v106 = vld [vmem:[%s105] sm:$0xf]
    %v107 = vld [vmem:[%s105 + $0x4] sm:$0xf]
    %v108 = vld [vmem:[%s105 + $0x8] sm:$0xf]
    %v109 = vld [vmem:[%s105 + $0xc] sm:$0xf]
    %v110 = vld [vmem:[%s105 + $0x10] sm:$0xf]
    %v111 = vld [vmem:[%s105 + $0x14] sm:$0xf]
    %v112 = vld [vmem:[%s105 + $0x18] sm:$0xf]
    %v113 = vld [vmem:[%s105 + $0x1c] sm:$0xf]
    %v114 = vld [vmem:[%s105 + $0x20] sm:$0xf]
    %v115 = vld [vmem:[%s105 + $0x24] sm:$0xf]
    %v116 = vld [vmem:[%s105 + $0x28] sm:$0xf]
    %v117 = vld [vmem:[%s105 + $0x2c] sm:$0xf]
    %v118 = vld [vmem:[%s105 + $0x30] sm:$0xf]
    %v119 = vld [vmem:[%s105 + $0x34] sm:$0xf]
    %v120 = vld [vmem:[%s105 + $0x38] sm:$0xf]
    %v121 = vld [vmem:[%s105 + $0x3c] sm:$0xf]
    %v127 = vunpack.c.l.b16 %v83
    %v128 = vunpack.c.l.b16 %v84
    %v129 = vunpack.c.l.b16 %v85
    %v130 = vunpack.c.l.b16 %v86
    %v131 = vunpack.c.l.b16 %v104
    %v132 = vpack.c.b16 %v128, %v127
    %v133 = vpack.c.b16 %v130, %v129
    %v134 = vpack.c.b16 %v131, %v131
    %vm135 = vsmask.f32 7424
    %v137 = vshrl.u32 %v132, 16
    %v139 = vshll.u32 %v132, 16
    %v141 = vrot.slane %v139, 1
    %v142 = vor.u32 %v137, %v141
    %v144 = vshll.u32 %v133, 16
    %v146 = vrot.slane %v144, 1
    %v147 = vsel %vm135, %v142, %v146
    %v148 = vshrl.u32 %v133, 16
    %v150 = vor.u32 %v148, %v146
    %v152 = vshll.u32 %v134, 16
    %v154 = vrot.slane %v152, 1
    %v155 = vsel %vm135, %v150, %v154
    %v156 = vshrl.u32 %v134, 16
    %v158 = vor.u32 %v156, %v154
    %v178 = vunpack.c.l.b16 %v106
    %v179 = vunpack.c.l.b16 %v107
    %v180 = vunpack.c.l.b16 %v108
    %v181 = vunpack.c.l.b16 %v109
    %v182 = vunpack.c.l.b16 %v110
    %v183 = vunpack.c.l.b16 %v111
    %v184 = vunpack.c.l.b16 %v112
    %v185 = vunpack.c.l.b16 %v113
    %v186 = vunpack.c.l.b16 %v114
    %v187 = vunpack.c.l.b16 %v115
    %v188 = vunpack.c.l.b16 %v116
    %v189 = vunpack.c.l.b16 %v117
    %v190 = vunpack.c.l.b16 %v118
    %v191 = vunpack.c.l.b16 %v119
    %v192 = vunpack.c.l.b16 %v120
    %v193 = vunpack.c.l.b16 %v121
    %v194 = vpack.c.b16 %v179, %v178
    %v195 = vpack.c.b16 %v181, %v180
    %v196 = vpack.c.b16 %v183, %v182
    %v197 = vpack.c.b16 %v185, %v184
    %v198 = vpack.c.b16 %v187, %v186
    %v199 = vpack.c.b16 %v189, %v188
    %v200 = vpack.c.b16 %v191, %v190
    %v201 = vpack.c.b16 %v193, %v192
    %210 = vmatprep.subr.bf16.mxu0 0
    %211 = vmatpush1.bf16.msra.mxu0 %v194
    %212 = vmatprep.subr.bf16.mxu0 0
    %213 = vmatpush1.bf16.msra.mxu0 %v195
    %214 = vmatprep.subr.bf16.mxu0 0
    %215 = vmatpush1.bf16.msra.mxu0 %v196
    %216 = vmatprep.subr.bf16.mxu0 0
    %217 = vmatpush1.bf16.msra.mxu0 %v197
    %218 = vmatprep.subr.bf16.mxu0 0
    %219 = vmatpush1.bf16.msra.mxu0 %v198
    %220 = vmatprep.subr.bf16.mxu0 0
    %221 = vmatpush1.bf16.msra.mxu0 %v199
    %222 = vmatprep.subr.bf16.mxu0 0
    %223 = vmatpush1.bf16.msra.mxu0 %v200
    %224 = vmatprep.subr.bf16.mxu0 0
    %225 = vmatpush1.bf16.msra.mxu0 %v201
    %226 = vmatprep.subr.bf16.mxu0 0
    %227 = vmatpush1.bf16.msra.mxu0 0
    %228 = vmatprep.subr.bf16.mxu0 0
    %229 = vmatpush1.bf16.msra.mxu0 0
    %230 = vmatprep.subr.bf16.mxu0 0
    %231 = vmatpush1.bf16.msra.mxu0 0
    %232 = vmatprep.subr.bf16.mxu0 0
    %233 = vmatpush1.bf16.msra.mxu0 0
    %234 = vmatprep.subr.bf16.mxu0 0
    %235 = vmatpush1.bf16.msra.mxu0 0
    %236 = vmatprep.subr.bf16.mxu0 0
    %237 = vmatpush1.bf16.msra.mxu0 0
    %238 = vmatprep.subr.bf16.mxu0 0
    %239 = vmatpush1.bf16.msra.mxu0 0
    %240 = vmatprep.subr.bf16.mxu0 0
    %241 = vmatpush1.bf16.msra.mxu0 0
    %242 = vmatprep.mubr.bf16.mxu0 0
    %243 = vmatmul.mubr.bf16.gmra.mrb[0].mxu0 %v147
    %v244 = vpop.f32.mrb[0].mxu0
    %v245 = vadd.f32 0.0, %v244
    %v246 = vpop.f32.mrb[0].mxu0
    %v247 = vpop.f32.mrb[0].mxu0
    %v248 = vadd.f32 0.0, %v247
    %v249 = vpop.f32.mrb[0].mxu0
    %250 = vmatprep.mubr.bf16.mxu0 0
    %251 = vmatmul.mubr.bf16.gmra.mrb[0].mxu0 %v155
    %v252 = vpop.f32.mrb[0].mxu0
    %v253 = vadd.f32 0.0, %v252
    %v254 = vpop.f32.mrb[0].mxu0
    %v255 = vpop.f32.mrb[0].mxu0
    %v256 = vadd.f32 0.0, %v255
    %v257 = vpop.f32.mrb[0].mxu0
    %258 = vmatprep.mubr.bf16.mxu0 0
    %259 = vmatmul.mubr.bf16.gmra.mrb[0].mxu0 %v158
    %v260 = vpop.f32.mrb[0].mxu0
    %v261 = vadd.f32 0.0, %v260
    %v262 = vpop.f32.mrb[0].mxu0
    %v263 = vpop.f32.mrb[0].mxu0
    %v264 = vpop.f32.mrb[0].mxu0
    %265 = vdwg.mxu0
    %v267 = vunpack.c.l.b16 %v87
    %v268 = vpack.c.b16 %v267, %v267
    %v288 = vunpack.c.l.b16 %v88
    %v289 = vunpack.c.l.b16 %v89
    %v290 = vunpack.c.l.b16 %v90
    %v291 = vunpack.c.l.b16 %v91
    %v292 = vunpack.c.l.b16 %v92
    %v293 = vunpack.c.l.b16 %v93
    %v294 = vunpack.c.l.b16 %v94
    %v295 = vunpack.c.l.b16 %v95
    %v296 = vunpack.c.l.b16 %v96
    %v297 = vunpack.c.l.b16 %v97
    %v298 = vunpack.c.l.b16 %v98
    %v299 = vunpack.c.l.b16 %v99
    %v300 = vunpack.c.l.b16 %v100
    %v301 = vunpack.c.l.b16 %v101
    %v302 = vunpack.c.l.b16 %v102
    %v303 = vunpack.c.l.b16 %v103
    %v304 = vpack.c.b16 %v289, %v288
    %v305 = vpack.c.b16 %v291, %v290
    %v306 = vpack.c.b16 %v293, %v292
    %v307 = vpack.c.b16 %v295, %v294
    %v308 = vpack.c.b16 %v297, %v296
    %v309 = vpack.c.b16 %v299, %v298
    %v310 = vpack.c.b16 %v301, %v300
    %v311 = vpack.c.b16 %v303, %v302
    %320 = vmatprep.subr.bf16.mxu0 0
    %321 = vmatpush1.bf16.msra.mxu0 %v304
    %322 = vmatprep.subr.bf16.mxu0 0
    %323 = vmatpush1.bf16.msra.mxu0 %v305
    %324 = vmatprep.subr.bf16.mxu0 0
    %325 = vmatpush1.bf16.msra.mxu0 %v306
    %326 = vmatprep.subr.bf16.mxu0 0
    %327 = vmatpush1.bf16.msra.mxu0 %v307
    %328 = vmatprep.subr.bf16.mxu0 0
    %329 = vmatpush1.bf16.msra.mxu0 %v308
    %330 = vmatprep.subr.bf16.mxu0 0
    %331 = vmatpush1.bf16.msra.mxu0 %v309
    %332 = vmatprep.subr.bf16.mxu0 0
    %333 = vmatpush1.bf16.msra.mxu0 %v310
    %334 = vmatprep.subr.bf16.mxu0 0
    %335 = vmatpush1.bf16.msra.mxu0 %v311
    %336 = vmatprep.subr.bf16.mxu0 0
    %337 = vmatpush1.bf16.msra.mxu0 0
    %338 = vmatprep.subr.bf16.mxu0 0
    %339 = vmatpush1.bf16.msra.mxu0 0
    %340 = vmatprep.subr.bf16.mxu0 0
    %341 = vmatpush1.bf16.msra.mxu0 0
    %342 = vmatprep.subr.bf16.mxu0 0
    %343 = vmatpush1.bf16.msra.mxu0 0
    %344 = vmatprep.subr.bf16.mxu0 0
    %345 = vmatpush1.bf16.msra.mxu0 0
    %346 = vmatprep.subr.bf16.mxu0 0
    %347 = vmatpush1.bf16.msra.mxu0 0
    %348 = vmatprep.subr.bf16.mxu0 0
    %349 = vmatpush1.bf16.msra.mxu0 0
    %350 = vmatprep.subr.bf16.mxu0 0
    %351 = vmatpush1.bf16.msra.mxu0 0
    %352 = vmatprep.mubr.bf16.mxu0 0
    %353 = vmatmul.mubr.bf16.gmra.mrb[0].mxu0 %v132
    %v354 = vpop.f32.mrb[0].mxu0
    %v355 = vadd.f32 %v245, %v354
    %v356 = vpop.f32.mrb[0].mxu0
    %v357 = vpop.f32.mrb[0].mxu0
    %v358 = vadd.f32 %v248, %v357
    %v359 = vpop.f32.mrb[0].mxu0
    %360 = vmatprep.mubr.bf16.mxu0 0
    %361 = vmatmul.mubr.bf16.gmra.mrb[0].mxu0 %v133
    %v362 = vpop.f32.mrb[0].mxu0
    %v363 = vadd.f32 %v253, %v362
    %v364 = vpop.f32.mrb[0].mxu0
    %v365 = vpop.f32.mrb[0].mxu0
    %v366 = vadd.f32 %v256, %v365
    %v367 = vpop.f32.mrb[0].mxu0
    %368 = vmatprep.mubr.bf16.mxu0 0
    %369 = vmatmul.mubr.bf16.gmra.mrb[0].mxu0 %v268
    %v370 = vpop.f32.mrb[0].mxu0
    %v371 = vadd.f32 %v261, %v370
    %v372 = vpop.f32.mrb[0].mxu0
    %v373 = vpop.f32.mrb[0].mxu0
    %v374 = vpop.f32.mrb[0].mxu0
    %375 = vdwg.mxu0
    %v376 = vld [vmem:[#allocation4] sm:$0xe]
    %s377 = scalar_lea.vmem [#allocation7], 128
    %v378 = vld [vmem:[%s377] sm:$0xf]
    %v379 = vld [vmem:[%s377 + $0x4] sm:$0xf]
    %v380 = vld [vmem:[%s377 + $0x8] sm:$0xf]
    %v381 = vld [vmem:[%s377 + $0xc] sm:$0xf]
    %v382 = vld [vmem:[%s377 + $0x10] sm:$0xf]
    %v383 = vld [vmem:[%s377 + $0x14] sm:$0xf]
    %v384 = vld [vmem:[%s377 + $0x18] sm:$0xf]
    %v385 = vld [vmem:[%s377 + $0x1c] sm:$0xf]
    %v386 = vld [vmem:[%s377 + $0x20] sm:$0xf]
    %v387 = vld [vmem:[%s377 + $0x24] sm:$0xf]
    %v388 = vld [vmem:[%s377 + $0x28] sm:$0xf]
    %v389 = vld [vmem:[%s377 + $0x2c] sm:$0xf]
    %v390 = vld [vmem:[%s377 + $0x30] sm:$0xf]
    %v391 = vld [vmem:[%s377 + $0x34] sm:$0xf]
    %v392 = vld [vmem:[%s377 + $0x38] sm:$0xf]
    %v393 = vld [vmem:[%s377 + $0x3c] sm:$0xf]
    %v395 = vunpack.c.l.b16 %v376
    %v396 = vpack.c.b16 %v128, %v395
    %vm397 = vcmask 1046528
    %v398 = vrot.slane %v396, 1
    %v399 = vrot.slane %v133, 1
    %v400 = vsel %vm397, %v398, %v399
    %v401 = vrot.slane %v134, 1
    %v402 = vsel %vm397, %v399, %v401
    %v422 = vunpack.c.l.b16 %v378
    %v423 = vunpack.c.l.b16 %v379
    %v424 = vunpack.c.l.b16 %v380
    %v425 = vunpack.c.l.b16 %v381
    %v426 = vunpack.c.l.b16 %v382
    %v427 = vunpack.c.l.b16 %v383
    %v428 = vunpack.c.l.b16 %v384
    %v429 = vunpack.c.l.b16 %v385
    %v430 = vunpack.c.l.b16 %v386
    %v431 = vunpack.c.l.b16 %v387
    %v432 = vunpack.c.l.b16 %v388
    %v433 = vunpack.c.l.b16 %v389
    %v434 = vunpack.c.l.b16 %v390
    %v435 = vunpack.c.l.b16 %v391
    %v436 = vunpack.c.l.b16 %v392
    %v437 = vunpack.c.l.b16 %v393
    %v438 = vpack.c.b16 %v423, %v422
    %v439 = vpack.c.b16 %v425, %v424
    %v440 = vpack.c.b16 %v427, %v426
    %v441 = vpack.c.b16 %v429, %v428
    %v442 = vpack.c.b16 %v431, %v430
    %v443 = vpack.c.b16 %v433, %v432
    %v444 = vpack.c.b16 %v435, %v434
    %v445 = vpack.c.b16 %v437, %v436
    %454 = vmatprep.subr.bf16.mxu0 0
    %455 = vmatpush1.bf16.msra.mxu0 %v438
    %456 = vmatprep.subr.bf16.mxu0 0
    %457 = vmatpush1.bf16.msra.mxu0 %v439
    %458 = vmatprep.subr.bf16.mxu0 0
    %459 = vmatpush1.bf16.msra.mxu0 %v440
    %460 = vmatprep.subr.bf16.mxu0 0
    %461 = vmatpush1.bf16.msra.mxu0 %v441
    %462 = vmatprep.subr.bf16.mxu0 0
    %463 = vmatpush1.bf16.msra.mxu0 %v442
    %464 = vmatprep.subr.bf16.mxu0 0
    %465 = vmatpush1.bf16.msra.mxu0 %v443
    %466 = vmatprep.subr.bf16.mxu0 0
    %467 = vmatpush1.bf16.msra.mxu0 %v444
    %468 = vmatprep.subr.bf16.mxu0 0
    %469 = vmatpush1.bf16.msra.mxu0 %v445
    %470 = vmatprep.subr.bf16.mxu0 0
    %471 = vmatpush1.bf16.msra.mxu0 0
    %472 = vmatprep.subr.bf16.mxu0 0
    %473 = vmatpush1.bf16.msra.mxu0 0
    %474 = vmatprep.subr.bf16.mxu0 0
    %475 = vmatpush1.bf16.msra.mxu0 0
    %476 = vmatprep.subr.bf16.mxu0 0
    %477 = vmatpush1.bf16.msra.mxu0 0
    %478 = vmatprep.subr.bf16.mxu0 0
    %479 = vmatpush1.bf16.msra.mxu0 0
    %480 = vmatprep.subr.bf16.mxu0 0
    %481 = vmatpush1.bf16.msra.mxu0 0
    %482 = vmatprep.subr.bf16.mxu0 0
    %483 = vmatpush1.bf16.msra.mxu0 0
    %484 = vmatprep.subr.bf16.mxu0 0
    %485 = vmatpush1.bf16.msra.mxu0 0
    %486 = vmatprep.mubr.bf16.mxu0 0
    %487 = vmatmul.mubr.bf16.gmra.mrb[0].mxu0 %v400
    %v488 = vpop.f32.mrb[0].mxu0
    %v489 = vadd.f32 0.0, %v488
    %v490 = vpop.f32.mrb[0].mxu0
    %v491 = vpop.f32.mrb[0].mxu0
    %v492 = vadd.f32 0.0, %v491
    %v493 = vpop.f32.mrb[0].mxu0
    %494 = vmatprep.mubr.bf16.mxu0 0
    %495 = vmatmul.mubr.bf16.gmra.mrb[0].mxu0 %v402
    %v496 = vpop.f32.mrb[0].mxu0
    %v497 = vadd.f32 0.0, %v496
    %v498 = vpop.f32.mrb[0].mxu0
    %v499 = vpop.f32.mrb[0].mxu0
    %v500 = vadd.f32 0.0, %v499
    %v501 = vpop.f32.mrb[0].mxu0
    %502 = vmatprep.mubr.bf16.mxu0 0
    %503 = vmatmul.mubr.bf16.gmra.mrb[0].mxu0 %v401
    %v504 = vpop.f32.mrb[0].mxu0
    %v505 = vadd.f32 0.0, %v504
    %v506 = vpop.f32.mrb[0].mxu0
    %v507 = vpop.f32.mrb[0].mxu0
    %v508 = vpop.f32.mrb[0].mxu0
    %509 = vdwg.mxu0
    %v510 = vadd.f32 %v355, %v489
    %v511 = vadd.f32 %v358, %v492
    %v512 = vadd.f32 %v363, %v497
    %v513 = vadd.f32 %v366, %v500
    %v514 = vadd.f32 %v371, %v505
    %v515 = vld [vmem:[%s2] sm:$0x1]
    %v517 = vlaneseq
    %v518 = vshrl.u32 %v517, 7
    %v519 = vsub.s32 0, %v518
    %v520 = vrot.slane %v515, %v519
    %v522 = vadd.f32 %v510, %v520
    %v523 = vadd.f32 %v511, %v520
    %v524 = vadd.f32 %v512, %v520
    %v525 = vadd.f32 %v513, %v520
    %v526 = vadd.f32 %v514, %v520
    %v527 = vmax.f32 %v522, 0.0
    %v528 = vmax.f32 %v523, 0.0
    %v529 = vmax.f32 %v524, 0.0
    %v530 = vmax.f32 %v525, 0.0
    %v531 = vmax.f32 %v526, 0.0
    %vm532 = vcmask 1040384
    %vm533 = vsmask.f32 256
    %vm534 = vmand %vm532, %vm533
    %v535 = vld [vmem:[#allocation2] sm:$0x1]
    %v536 = vsel %vm534, 0, %v535
    %537 = vst [vmem:[#allocation2] sm:$0x1] %v536
    %vm538 = vsmask.f32 7938
    %vm539 = vmand %vm532, %vm538
    %v540 = vld [vmem:[#allocation2 + $0x8] sm:$0x1]
    %v541 = vsel %vm539, 0, %v540
    %542 = vst [vmem:[#allocation2 + $0x8] sm:$0x1] %v541
    %v543 = vpack.c.bf16 %v528, %v527
    %v545 = vunpack.c.l.b16 %v543
    %v546 = vunpack.c.h.b16 %v543
    %v547 = vpack.c.b16 %v545, %v545
    %v548 = vpack.c.b16 %v546, %v546
    %vm549 = vsmask.f32 4368
    %vm550 = vmor %vm533, %vm549
    %v552 = vshrl.u32 %v547, 16
    %v554 = vrot.slane %v552, 7
    %v555 = vshll.u32 %v547, 16
    %v557 = vor.u32 %v554, %v555
    %v558 = vrot.slane %v554, 4
    %v560 = vshrl.u32 %v548, 16
    %v562 = vrot.slane %v560, 7
    %v563 = vshll.u32 %v548, 16
    %v565 = vor.u32 %v562, %v563
    %v566 = vsel %vm550, %v558, %v565
    %v567 = vrot.slane %v562, 4
    %vm571 = vcmask 1043456
    %vm572 = vmand %vm571, %vm538
    %v573 = vld [vmem:[#allocation2] sm:$0xf]
    %v574 = vsel %vm572, %v557, %v573
    %575 = vst [vmem:[#allocation2] sm:$0xf] %v574
    %576 = vst [vmem:[#allocation2 + $0x4] sm:$0xf] %v566
    %v577 = vld [vmem:[#allocation2 + $0x8] sm:$0x1]
    %v578 = vsel %vm534, %v567, %v577
    %579 = vst [vmem:[#allocation2 + $0x8] sm:$0x1] %v578
    %vm580 = vcmask 1041409
    %vm581 = vsmask.f32 1280
    %vm582 = vmand %vm580, %vm581
    %v583 = vld [vmem:[#allocation2 + $0x8] sm:$0x2]
    %v584 = vsel %vm582, 0, %v583
    %585 = vst [vmem:[#allocation2 + $0x8] sm:$0x2] %v584
    %vm586 = vsmask.f32 7942
    %vm587 = vmand %vm580, %vm586
    %v588 = vld [vmem:[#allocation2 + $0x10] sm:$0x2]
    %v589 = vsel %vm587, 0, %v588
    %590 = vst [vmem:[#allocation2 + $0x10] sm:$0x2] %v589
    %v591 = vpack.c.bf16 %v530, %v529
    %v592 = vpack.c.bf16 %v531, %v531
    %v595 = vunpack.c.l.b16 %v591
    %v596 = vunpack.c.h.b16 %v591
    %v597 = vunpack.c.l.b16 %v592
    %v598 = vpack.c.b16 %v595, %v595
    %v599 = vpack.c.b16 %v596, %v596
    %v600 = vpack.c.b16 %v597, %v597
    %v602 = vshrl.u32 %v598, 16
    %v604 = vrot.slane %v602, 7
    %v605 = vshll.u32 %v598, 16
    %v607 = vor.u32 %v604, %v605
    %v608 = vrot.slane %v604, 4
    %v610 = vshrl.u32 %v599, 16
    %v612 = vrot.slane %v610, 7
    %v613 = vshll.u32 %v599, 16
    %v615 = vor.u32 %v612, %v613
    %v616 = vsel %vm550, %v608, %v615
    %v617 = vrot.slane %v612, 4
    %v619 = vshrl.u32 %v600, 16
    %v621 = vrot.slane %v619, 7
    %v622 = vshll.u32 %v600, 16
    %v624 = vor.u32 %v621, %v622
    %v625 = vsel %vm550, %v617, %v624
    %vm629 = vcmask 1043457
    %vm630 = vmand %vm629, %vm586
    %v631 = vld [vmem:[#allocation2 + $0x8] sm:$0xe]
    %v632 = vsel %vm630, %v607, %v631
    %633 = vst [vmem:[#allocation2 + $0x8] sm:$0xe] %v632
    %634 = vst [vmem:[#allocation2 + $0xc] sm:$0xf] %v616
    %vm635 = vcmask 1041408
    %vm636 = vmand %vm635, %vm581
    %v637 = vld [vmem:[#allocation2 + $0x10] sm:$0x3]
    %v638 = vsel %vm636, %v625, %v637
    %639 = vst [vmem:[#allocation2 + $0x10] sm:$0x3] %v638
    %v640 = vld [vmem:[#allocation2] sm:$0xf]
    %v641 = vld [vmem:[#allocation2 + $0x4] sm:$0xf]
    %v642 = vld [vmem:[#allocation2 + $0x8] sm:$0xf]
    %v643 = vld [vmem:[#allocation2 + $0xc] sm:$0xf]
    %v644 = vld [vmem:[#allocation2 + $0x10] sm:$0x1]
    %v645 = vld [vmem:[#allocation9] sm:$0xf]
    %v646 = vld [vmem:[#allocation9 + $0x4] sm:$0xf]
    %v647 = vld [vmem:[#allocation9 + $0x8] sm:$0xf]
    %v648 = vld [vmem:[#allocation9 + $0xc] sm:$0xf]
    %v649 = vld [vmem:[#allocation9 + $0x10] sm:$0xf]
    %v650 = vld [vmem:[#allocation9 + $0x14] sm:$0xf]
    %v651 = vld [vmem:[#allocation9 + $0x18] sm:$0xf]
    %v652 = vld [vmem:[#allocation9 + $0x1c] sm:$0xf]
    %v653 = vld [vmem:[#allocation9 + $0x20] sm:$0xf]
    %v654 = vld [vmem:[#allocation9 + $0x24] sm:$0xf]
    %v655 = vld [vmem:[#allocation9 + $0x28] sm:$0xf]
    %v656 = vld [vmem:[#allocation9 + $0x2c] sm:$0xf]
    %v657 = vld [vmem:[#allocation9 + $0x30] sm:$0xf]
    %v658 = vld [vmem:[#allocation9 + $0x34] sm:$0xf]
    %v659 = vld [vmem:[#allocation9 + $0x38] sm:$0xf]
    %v660 = vld [vmem:[#allocation9 + $0x3c] sm:$0xf]
    %v661 = vld [vmem:[#allocation2 + $0x10] sm:$0x3]
    %s662 = scalar_lea.vmem [#allocation9], 64
    %v663 = vld [vmem:[%s662] sm:$0xf]
    %v664 = vld [vmem:[%s662 + $0x4] sm:$0xf]
    %v665 = vld [vmem:[%s662 + $0x8] sm:$0xf]
    %v666 = vld [vmem:[%s662 + $0xc] sm:$0xf]
    %v667 = vld [vmem:[%s662 + $0x10] sm:$0xf]
    %v668 = vld [vmem:[%s662 + $0x14] sm:$0xf]
    %v669 = vld [vmem:[%s662 + $0x18] sm:$0xf]
    %v670 = vld [vmem:[%s662 + $0x1c] sm:$0xf]
    %v671 = vld [vmem:[%s662 + $0x20] sm:$0xf]
    %v672 = vld [vmem:[%s662 + $0x24] sm:$0xf]
    %v673 = vld [vmem:[%s662 + $0x28] sm:$0xf]
    %v674 = vld [vmem:[%s662 + $0x2c] sm:$0xf]
    %v675 = vld [vmem:[%s662 + $0x30] sm:$0xf]
    %v676 = vld [vmem:[%s662 + $0x34] sm:$0xf]
    %v677 = vld [vmem:[%s662 + $0x38] sm:$0xf]
    %v678 = vld [vmem:[%s662 + $0x3c] sm:$0xf]
    %v684 = vunpack.c.l.b16 %v640
    %v685 = vunpack.c.l.b16 %v641
    %v686 = vunpack.c.l.b16 %v642
    %v687 = vunpack.c.l.b16 %v643
    %v688 = vunpack.c.l.b16 %v661
    %v689 = vpack.c.b16 %v685, %v684
    %v690 = vpack.c.b16 %v687, %v686
    %v691 = vpack.c.b16 %v688, %v688
    %v693 = vshrl.u32 %v689, 16
    %v695 = vshll.u32 %v689, 16
    %v697 = vrot.slane %v695, 1
    %v698 = vor.u32 %v693, %v697
    %v700 = vshll.u32 %v690, 16
    %v702 = vrot.slane %v700, 1
    %v703 = vsel %vm135, %v698, %v702
    %v704 = vshrl.u32 %v690, 16
    %v706 = vor.u32 %v704, %v702
    %v708 = vshll.u32 %v691, 16
    %v710 = vrot.slane %v708, 1
    %v711 = vsel %vm135, %v706, %v710
    %v712 = vshrl.u32 %v691, 16
    %v714 = vor.u32 %v712, %v710
    %v734 = vunpack.c.l.b16 %v663
    %v735 = vunpack.c.l.b16 %v664
    %v736 = vunpack.c.l.b16 %v665
    %v737 = vunpack.c.l.b16 %v666
    %v738 = vunpack.c.l.b16 %v667
    %v739 = vunpack.c.l.b16 %v668
    %v740 = vunpack.c.l.b16 %v669
    %v741 = vunpack.c.l.b16 %v670
    %v742 = vunpack.c.l.b16 %v671
    %v743 = vunpack.c.l.b16 %v672
    %v744 = vunpack.c.l.b16 %v673
    %v745 = vunpack.c.l.b16 %v674
    %v746 = vunpack.c.l.b16 %v675
    %v747 = vunpack.c.l.b16 %v676
    %v748 = vunpack.c.l.b16 %v677
    %v749 = vunpack.c.l.b16 %v678
    %v750 = vpack.c.b16 %v735, %v734
    %v751 = vpack.c.b16 %v737, %v736
    %v752 = vpack.c.b16 %v739, %v738
    %v753 = vpack.c.b16 %v741, %v740
    %v754 = vpack.c.b16 %v743, %v742
    %v755 = vpack.c.b16 %v745, %v744
    %v756 = vpack.c.b16 %v747, %v746
    %v757 = vpack.c.b16 %v749, %v748
    %766 = vmatprep.subr.bf16.mxu0 0
    %767 = vmatpush1.bf16.msra.mxu0 %v750
    %768 = vmatprep.subr.bf16.mxu0 0
    %769 = vmatpush1.bf16.msra.mxu0 %v751
    %770 = vmatprep.subr.bf16.mxu0 0
    %771 = vmatpush1.bf16.msra.mxu0 %v752
    %772 = vmatprep.subr.bf16.mxu0 0
    %773 = vmatpush1.bf16.msra.mxu0 %v753
    %774 = vmatprep.subr.bf16.mxu0 0
    %775 = vmatpush1.bf16.msra.mxu0 %v754
    %776 = vmatprep.subr.bf16.mxu0 0
    %777 = vmatpush1.bf16.msra.mxu0 %v755
    %778 = vmatprep.subr.bf16.mxu0 0
    %779 = vmatpush1.bf16.msra.mxu0 %v756
    %780 = vmatprep.subr.bf16.mxu0 0
    %781 = vmatpush1.bf16.msra.mxu0 %v757
    %782 = vmatprep.subr.bf16.mxu0 0
    %783 = vmatpush1.bf16.msra.mxu0 0
    %784 = vmatprep.subr.bf16.mxu0 0
    %785 = vmatpush1.bf16.msra.mxu0 0
    %786 = vmatprep.subr.bf16.mxu0 0
    %787 = vmatpush1.bf16.msra.mxu0 0
    %788 = vmatprep.subr.bf16.mxu0 0
    %789 = vmatpush1.bf16.msra.mxu0 0
    %790 = vmatprep.subr.bf16.mxu0 0
    %791 = vmatpush1.bf16.msra.mxu0 0
    %792 = vmatprep.subr.bf16.mxu0 0
    %793 = vmatpush1.bf16.msra.mxu0 0
    %794 = vmatprep.subr.bf16.mxu0 0
    %795 = vmatpush1.bf16.msra.mxu0 0
    %796 = vmatprep.subr.bf16.mxu0 0
    %797 = vmatpush1.bf16.msra.mxu0 0
    %798 = vmatprep.mubr.bf16.mxu0 0
    %799 = vmatmul.mubr.bf16.gmra.mrb[0].mxu0 %v703
    %v800 = vpop.f32.mrb[0].mxu0
    %v801 = vadd.f32 0.0, %v800
    %v802 = vpop.f32.mrb[0].mxu0
    %v803 = vpop.f32.mrb[0].mxu0
    %v804 = vadd.f32 0.0, %v803
    %v805 = vpop.f32.mrb[0].mxu0
    %806 = vmatprep.mubr.bf16.mxu0 0
    %807 = vmatmul.mubr.bf16.gmra.mrb[0].mxu0 %v711
    %v808 = vpop.f32.mrb[0].mxu0
    %v809 = vadd.f32 0.0, %v808
    %v810 = vpop.f32.mrb[0].mxu0
    %v811 = vpop.f32.mrb[0].mxu0
    %v812 = vadd.f32 0.0, %v811
    %v813 = vpop.f32.mrb[0].mxu0
    %814 = vmatprep.mubr.bf16.mxu0 0
    %815 = vmatmul.mubr.bf16.gmra.mrb[0].mxu0 %v714
    %v816 = vpop.f32.mrb[0].mxu0
    %v817 = vadd.f32 0.0, %v816
    %v818 = vpop.f32.mrb[0].mxu0
    %v819 = vpop.f32.mrb[0].mxu0
    %v820 = vpop.f32.mrb[0].mxu0
    %821 = vdwg.mxu0
    %v823 = vunpack.c.l.b16 %v644
    %v824 = vpack.c.b16 %v823, %v823
    %v844 = vunpack.c.l.b16 %v645
    %v845 = vunpack.c.l.b16 %v646
    %v846 = vunpack.c.l.b16 %v647
    %v847 = vunpack.c.l.b16 %v648
    %v848 = vunpack.c.l.b16 %v649
    %v849 = vunpack.c.l.b16 %v650
    %v850 = vunpack.c.l.b16 %v651
    %v851 = vunpack.c.l.b16 %v652
    %v852 = vunpack.c.l.b16 %v653
    %v853 = vunpack.c.l.b16 %v654
    %v854 = vunpack.c.l.b16 %v655
    %v855 = vunpack.c.l.b16 %v656
    %v856 = vunpack.c.l.b16 %v657
    %v857 = vunpack.c.l.b16 %v658
    %v858 = vunpack.c.l.b16 %v659
    %v859 = vunpack.c.l.b16 %v660
    %v860 = vpack.c.b16 %v845, %v844
    %v861 = vpack.c.b16 %v847, %v846
    %v862 = vpack.c.b16 %v849, %v848
    %v863 = vpack.c.b16 %v851, %v850
    %v864 = vpack.c.b16 %v853, %v852
    %v865 = vpack.c.b16 %v855, %v854
    %v866 = vpack.c.b16 %v857, %v856
    %v867 = vpack.c.b16 %v859, %v858
    %876 = vmatprep.subr.bf16.mxu0 0
    %877 = vmatpush1.bf16.msra.mxu0 %v860
    %878 = vmatprep.subr.bf16.mxu0 0
    %879 = vmatpush1.bf16.msra.mxu0 %v861
    %880 = vmatprep.subr.bf16.mxu0 0
    %881 = vmatpush1.bf16.msra.mxu0 %v862
    %882 = vmatprep.subr.bf16.mxu0 0
    %883 = vmatpush1.bf16.msra.mxu0 %v863
    %884 = vmatprep.subr.bf16.mxu0 0
    %885 = vmatpush1.bf16.msra.mxu0 %v864
    %886 = vmatprep.subr.bf16.mxu0 0
    %887 = vmatpush1.bf16.msra.mxu0 %v865
    %888 = vmatprep.subr.bf16.mxu0 0
    %889 = vmatpush1.bf16.msra.mxu0 %v866
    %890 = vmatprep.subr.bf16.mxu0 0
    %891 = vmatpush1.bf16.msra.mxu0 %v867
    %892 = vmatprep.subr.bf16.mxu0 0
    %893 = vmatpush1.bf16.msra.mxu0 0
    %894 = vmatprep.subr.bf16.mxu0 0
    %895 = vmatpush1.bf16.msra.mxu0 0
    %896 = vmatprep.subr.bf16.mxu0 0
    %897 = vmatpush1.bf16.msra.mxu0 0
    %898 = vmatprep.subr.bf16.mxu0 0
    %899 = vmatpush1.bf16.msra.mxu0 0
    %900 = vmatprep.subr.bf16.mxu0 0
    %901 = vmatpush1.bf16.msra.mxu0 0
    %902 = vmatprep.subr.bf16.mxu0 0
    %903 = vmatpush1.bf16.msra.mxu0 0
    %904 = vmatprep.subr.bf16.mxu0 0
    %905 = vmatpush1.bf16.msra.mxu0 0
    %906 = vmatprep.subr.bf16.mxu0 0
    %907 = vmatpush1.bf16.msra.mxu0 0
    %908 = vmatprep.mubr.bf16.mxu0 0
    %909 = vmatmul.mubr.bf16.gmra.mrb[0].mxu0 %v689
    %v910 = vpop.f32.mrb[0].mxu0
    %v911 = vadd.f32 %v801, %v910
    %v912 = vpop.f32.mrb[0].mxu0
    %v913 = vpop.f32.mrb[0].mxu0
    %v914 = vadd.f32 %v804, %v913
    %v915 = vpop.f32.mrb[0].mxu0
    %916 = vmatprep.mubr.bf16.mxu0 0
    %917 = vmatmul.mubr.bf16.gmra.mrb[0].mxu0 %v690
    %v918 = vpop.f32.mrb[0].mxu0
    %v919 = vadd.f32 %v809, %v918
    %v920 = vpop.f32.mrb[0].mxu0
    %v921 = vpop.f32.mrb[0].mxu0
    %v922 = vadd.f32 %v812, %v921
    %v923 = vpop.f32.mrb[0].mxu0
    %924 = vmatprep.mubr.bf16.mxu0 0
    %925 = vmatmul.mubr.bf16.gmra.mrb[0].mxu0 %v824
    %v926 = vpop.f32.mrb[0].mxu0
    %v927 = vadd.f32 %v817, %v926
    %v928 = vpop.f32.mrb[0].mxu0
    %v929 = vpop.f32.mrb[0].mxu0
    %v930 = vpop.f32.mrb[0].mxu0
    %931 = vdwg.mxu0
    %v932 = vld [vmem:[#allocation2] sm:$0xe]
    %s933 = scalar_lea.vmem [#allocation9], 128
    %v934 = vld [vmem:[%s933] sm:$0xf]
    %v935 = vld [vmem:[%s933 + $0x4] sm:$0xf]
    %v936 = vld [vmem:[%s933 + $0x8] sm:$0xf]
    %v937 = vld [vmem:[%s933 + $0xc] sm:$0xf]
    %v938 = vld [vmem:[%s933 + $0x10] sm:$0xf]
    %v939 = vld [vmem:[%s933 + $0x14] sm:$0xf]
    %v940 = vld [vmem:[%s933 + $0x18] sm:$0xf]
    %v941 = vld [vmem:[%s933 + $0x1c] sm:$0xf]
    %v942 = vld [vmem:[%s933 + $0x20] sm:$0xf]
    %v943 = vld [vmem:[%s933 + $0x24] sm:$0xf]
    %v944 = vld [vmem:[%s933 + $0x28] sm:$0xf]
    %v945 = vld [vmem:[%s933 + $0x2c] sm:$0xf]
    %v946 = vld [vmem:[%s933 + $0x30] sm:$0xf]
    %v947 = vld [vmem:[%s933 + $0x34] sm:$0xf]
    %v948 = vld [vmem:[%s933 + $0x38] sm:$0xf]
    %v949 = vld [vmem:[%s933 + $0x3c] sm:$0xf]
    %v951 = vunpack.c.l.b16 %v932
    %v952 = vpack.c.b16 %v685, %v951
    %v953 = vrot.slane %v952, 1
    %v954 = vrot.slane %v690, 1
    %v955 = vsel %vm397, %v953, %v954
    %v956 = vrot.slane %v691, 1
    %v957 = vsel %vm397, %v954, %v956
    %v977 = vunpack.c.l.b16 %v934
    %v978 = vunpack.c.l.b16 %v935
    %v979 = vunpack.c.l.b16 %v936
    %v980 = vunpack.c.l.b16 %v937
    %v981 = vunpack.c.l.b16 %v938
    %v982 = vunpack.c.l.b16 %v939
    %v983 = vunpack.c.l.b16 %v940
    %v984 = vunpack.c.l.b16 %v941
    %v985 = vunpack.c.l.b16 %v942
    %v986 = vunpack.c.l.b16 %v943
    %v987 = vunpack.c.l.b16 %v944
    %v988 = vunpack.c.l.b16 %v945
    %v989 = vunpack.c.l.b16 %v946
    %v990 = vunpack.c.l.b16 %v947
    %v991 = vunpack.c.l.b16 %v948
    %v992 = vunpack.c.l.b16 %v949
    %v993 = vpack.c.b16 %v978, %v977
    %v994 = vpack.c.b16 %v980, %v979
    %v995 = vpack.c.b16 %v982, %v981
    %v996 = vpack.c.b16 %v984, %v983
    %v997 = vpack.c.b16 %v986, %v985
    %v998 = vpack.c.b16 %v988, %v987
    %v999 = vpack.c.b16 %v990, %v989
    %v1000 = vpack.c.b16 %v992, %v991
    %1009 = vmatprep.subr.bf16.mxu0 0
    %1010 = vmatpush1.bf16.msra.mxu0 %v993
    %1011 = vmatprep.subr.bf16.mxu0 0
    %1012 = vmatpush1.bf16.msra.mxu0 %v994
    %1013 = vmatprep.subr.bf16.mxu0 0
    %1014 = vmatpush1.bf16.msra.mxu0 %v995
    %1015 = vmatprep.subr.bf16.mxu0 0
    %1016 = vmatpush1.bf16.msra.mxu0 %v996
    %1017 = vmatprep.subr.bf16.mxu0 0
    %1018 = vmatpush1.bf16.msra.mxu0 %v997
    %1019 = vmatprep.subr.bf16.mxu0 0
    %1020 = vmatpush1.bf16.msra.mxu0 %v998
    %1021 = vmatprep.subr.bf16.mxu0 0
    %1022 = vmatpush1.bf16.msra.mxu0 %v999
    %1023 = vmatprep.subr.bf16.mxu0 0
    %1024 = vmatpush1.bf16.msra.mxu0 %v1000
    %1025 = vmatprep.subr.bf16.mxu0 0
    %1026 = vmatpush1.bf16.msra.mxu0 0
    %1027 = vmatprep.subr.bf16.mxu0 0
    %1028 = vmatpush1.bf16.msra.mxu0 0
    %1029 = vmatprep.subr.bf16.mxu0 0
    %1030 = vmatpush1.bf16.msra.mxu0 0
    %1031 = vmatprep.subr.bf16.mxu0 0
    %1032 = vmatpush1.bf16.msra.mxu0 0
    %1033 = vmatprep.subr.bf16.mxu0 0
    %1034 = vmatpush1.bf16.msra.mxu0 0
    %1035 = vmatprep.subr.bf16.mxu0 0
    %1036 = vmatpush1.bf16.msra.mxu0 0
    %1037 = vmatprep.subr.bf16.mxu0 0
    %1038 = vmatpush1.bf16.msra.mxu0 0
    %1039 = vmatprep.subr.bf16.mxu0 0
    %1040 = vmatpush1.bf16.msra.mxu0 0
    %1041 = vmatprep.mubr.bf16.mxu0 0
    %1042 = vmatmul.mubr.bf16.gmra.mrb[0].mxu0 %v955
    %v1043 = vpop.f32.mrb[0].mxu0
    %v1044 = vadd.f32 0.0, %v1043
    %v1045 = vpop.f32.mrb[0].mxu0
    %v1046 = vpop.f32.mrb[0].mxu0
    %v1047 = vadd.f32 0.0, %v1046
    %v1048 = vpop.f32.mrb[0].mxu0
    %1049 = vmatprep.mubr.bf16.mxu0 0
    %1050 = vmatmul.mubr.bf16.gmra.mrb[0].mxu0 %v957
    %v1051 = vpop.f32.mrb[0].mxu0
    %v1052 = vadd.f32 0.0, %v1051
    %v1053 = vpop.f32.mrb[0].mxu0
    %v1054 = vpop.f32.mrb[0].mxu0
    %v1055 = vadd.f32 0.0, %v1054
    %v1056 = vpop.f32.mrb[0].mxu0
    %1057 = vmatprep.mubr.bf16.mxu0 0
    %1058 = vmatmul.mubr.bf16.gmra.mrb[0].mxu0 %v956
    %v1059 = vpop.f32.mrb[0].mxu0
    %v1060 = vadd.f32 0.0, %v1059
    %v1061 = vpop.f32.mrb[0].mxu0
    %v1062 = vpop.f32.mrb[0].mxu0
    %v1063 = vpop.f32.mrb[0].mxu0
    %1064 = vdwg.mxu0
    %v1065 = vadd.f32 %v911, %v1044
    %v1066 = vadd.f32 %v914, %v1047
    %v1067 = vadd.f32 %v919, %v1052
    %v1068 = vadd.f32 %v922, %v1055
    %v1069 = vadd.f32 %v927, %v1060
    %v1070 = vld [vmem:[%s4] sm:$0x1]
    %v1072 = vlaneseq
    %v1073 = vshrl.u32 %v1072, 7
    %v1074 = vsub.s32 0, %v1073
    %v1075 = vrot.slane %v1070, %v1074
    %v1077 = vadd.f32 %v1065, %v1075
    %v1078 = vadd.f32 %v1066, %v1075
    %v1079 = vadd.f32 %v1067, %v1075
    %v1080 = vadd.f32 %v1068, %v1075
    %v1081 = vadd.f32 %v1069, %v1075
    %v1082 = vmax.f32 %v1077, 0.0
    %v1083 = vmax.f32 %v1078, 0.0
    %v1084 = vmax.f32 %v1079, 0.0
    %v1085 = vmax.f32 %v1080, 0.0
    %v1086 = vmax.f32 %v1081, 0.0
    %v1087 = vld [vmem:[#allocation3] sm:$0x1]
    %v1088 = vsel %vm534, 0, %v1087
    %1089 = vst [vmem:[#allocation3] sm:$0x1] %v1088
    %v1090 = vld [vmem:[#allocation3 + $0x8] sm:$0x1]
    %v1091 = vsel %vm539, 0, %v1090
    %1092 = vst [vmem:[#allocation3 + $0x8] sm:$0x1] %v1091
    %v1093 = vpack.c.bf16 %v1083, %v1082
    %v1095 = vunpack.c.l.b16 %v1093
    %v1096 = vunpack.c.h.b16 %v1093
    %v1097 = vpack.c.b16 %v1095, %v1095
    %v1098 = vpack.c.b16 %v1096, %v1096
    %v1100 = vshrl.u32 %v1097, 16
    %v1102 = vrot.slane %v1100, 7
    %v1103 = vshll.u32 %v1097, 16
    %v1105 = vor.u32 %v1102, %v1103
    %v1106 = vrot.slane %v1102, 4
    %v1108 = vshrl.u32 %v1098, 16
    %v1110 = vrot.slane %v1108, 7
    %v1111 = vshll.u32 %v1098, 16
    %v1113 = vor.u32 %v1110, %v1111
    %v1114 = vsel %vm550, %v1106, %v1113
    %v1115 = vrot.slane %v1110, 4
    %v1119 = vld [vmem:[#allocation3] sm:$0xf]
    %v1120 = vsel %vm572, %v1105, %v1119
    %1121 = vst [vmem:[#allocation3] sm:$0xf] %v1120
    %1122 = vst [vmem:[#allocation3 + $0x4] sm:$0xf] %v1114
    %v1123 = vld [vmem:[#allocation3 + $0x8] sm:$0x1]
    %v1124 = vsel %vm534, %v1115, %v1123
    %1125 = vst [vmem:[#allocation3 + $0x8] sm:$0x1] %v1124
    %v1126 = vld [vmem:[#allocation3 + $0x8] sm:$0x2]
    %v1127 = vsel %vm582, 0, %v1126
    %1128 = vst [vmem:[#allocation3 + $0x8] sm:$0x2] %v1127
    %v1129 = vld [vmem:[#allocation3 + $0x10] sm:$0x2]
    %v1130 = vsel %vm587, 0, %v1129
    %1131 = vst [vmem:[#allocation3 + $0x10] sm:$0x2] %v1130
    %v1132 = vpack.c.bf16 %v1085, %v1084
    %v1133 = vpack.c.bf16 %v1086, %v1086
    %v1136 = vunpack.c.l.b16 %v1132
    %v1137 = vunpack.c.h.b16 %v1132
    %v1138 = vunpack.c.l.b16 %v1133
    %v1139 = vpack.c.b16 %v1136, %v1136
    %v1140 = vpack.c.b16 %v1137, %v1137
    %v1141 = vpack.c.b16 %v1138, %v1138
    %v1143 = vshrl.u32 %v1139, 16
    %v1145 = vrot.slane %v1143, 7
    %v1146 = vshll.u32 %v1139, 16
    %v1148 = vor.u32 %v1145, %v1146
    %v1149 = vrot.slane %v1145, 4
    %v1151 = vshrl.u32 %v1140, 16
    %v1153 = vrot.slane %v1151, 7
    %v1154 = vshll.u32 %v1140, 16
    %v1156 = vor.u32 %v1153, %v1154
    %v1157 = vsel %vm550, %v1149, %v1156
    %v1158 = vrot.slane %v1153, 4
    %v1160 = vshrl.u32 %v1141, 16
    %v1162 = vrot.slane %v1160, 7
    %v1163 = vshll.u32 %v1141, 16
    %v1165 = vor.u32 %v1162, %v1163
    %v1166 = vsel %vm550, %v1158, %v1165
    %v1170 = vld [vmem:[#allocation3 + $0x8] sm:$0xe]
    %v1171 = vsel %vm630, %v1148, %v1170
    %1172 = vst [vmem:[#allocation3 + $0x8] sm:$0xe] %v1171
    %1173 = vst [vmem:[#allocation3 + $0xc] sm:$0xf] %v1157
    %v1174 = vld [vmem:[#allocation3 + $0x10] sm:$0x3]
    %v1175 = vsel %vm636, %v1166, %v1174
    %1176 = vst [vmem:[#allocation3 + $0x10] sm:$0x3] %v1175
    %v1177 = vld [vmem:[#allocation3] sm:$0xf]
    %v1178 = vld [vmem:[#allocation3 + $0x4] sm:$0xf]
    %v1179 = vld [vmem:[#allocation3 + $0x8] sm:$0xf]
    %v1180 = vld [vmem:[#allocation3 + $0xc] sm:$0xf]
    %v1181 = vld [vmem:[#allocation3 + $0x10] sm:$0x1]
    %v1182 = vld [vmem:[#allocation10] sm:$0xf]
    %v1183 = vld [vmem:[#allocation10 + $0x4] sm:$0xf]
    %v1184 = vld [vmem:[#allocation10 + $0x8] sm:$0xf]
    %v1185 = vld [vmem:[#allocation10 + $0xc] sm:$0xf]
    %v1186 = vld [vmem:[#allocation10 + $0x10] sm:$0xf]
    %v1187 = vld [vmem:[#allocation10 + $0x14] sm:$0xf]
    %v1188 = vld [vmem:[#allocation10 + $0x18] sm:$0xf]
    %v1189 = vld [vmem:[#allocation10 + $0x1c] sm:$0xf]
    %v1190 = vld [vmem:[#allocation10 + $0x20] sm:$0xf]
    %v1191 = vld [vmem:[#allocation10 + $0x24] sm:$0xf]
    %v1192 = vld [vmem:[#allocation10 + $0x28] sm:$0xf]
    %v1193 = vld [vmem:[#allocation10 + $0x2c] sm:$0xf]
    %v1194 = vld [vmem:[#allocation10 + $0x30] sm:$0xf]
    %v1195 = vld [vmem:[#allocation10 + $0x34] sm:$0xf]
    %v1196 = vld [vmem:[#allocation10 + $0x38] sm:$0xf]
    %v1197 = vld [vmem:[#allocation10 + $0x3c] sm:$0xf]
    %v1198 = vld [vmem:[#allocation3 + $0x10] sm:$0x3]
    %s1199 = scalar_lea.vmem [#allocation10], 64
    %v1200 = vld [vmem:[%s1199] sm:$0xf]
    %v1201 = vld [vmem:[%s1199 + $0x4] sm:$0xf]
    %v1202 = vld [vmem:[%s1199 + $0x8] sm:$0xf]
    %v1203 = vld [vmem:[%s1199 + $0xc] sm:$0xf]
    %v1204 = vld [vmem:[%s1199 + $0x10] sm:$0xf]
    %v1205 = vld [vmem:[%s1199 + $0x14] sm:$0xf]
    %v1206 = vld [vmem:[%s1199 + $0x18] sm:$0xf]
    %v1207 = vld [vmem:[%s1199 + $0x1c] sm:$0xf]
    %v1208 = vld [vmem:[%s1199 + $0x20] sm:$0xf]
    %v1209 = vld [vmem:[%s1199 + $0x24] sm:$0xf]
    %v1210 = vld [vmem:[%s1199 + $0x28] sm:$0xf]
    %v1211 = vld [vmem:[%s1199 + $0x2c] sm:$0xf]
    %v1212 = vld [vmem:[%s1199 + $0x30] sm:$0xf]
    %v1213 = vld [vmem:[%s1199 + $0x34] sm:$0xf]
    %v1214 = vld [vmem:[%s1199 + $0x38] sm:$0xf]
    %v1215 = vld [vmem:[%s1199 + $0x3c] sm:$0xf]
    %v1221 = vunpack.c.l.b16 %v1177
    %v1222 = vunpack.c.l.b16 %v1178
    %v1223 = vunpack.c.l.b16 %v1179
    %v1224 = vunpack.c.l.b16 %v1180
    %v1225 = vunpack.c.l.b16 %v1198
    %v1226 = vpack.c.b16 %v1222, %v1221
    %v1227 = vpack.c.b16 %v1224, %v1223
    %v1228 = vpack.c.b16 %v1225, %v1225
    %v1230 = vshrl.u32 %v1226, 16
    %v1232 = vshll.u32 %v1226, 16
    %v1234 = vrot.slane %v1232, 1
    %v1235 = vor.u32 %v1230, %v1234
    %v1237 = vshll.u32 %v1227, 16
    %v1239 = vrot.slane %v1237, 1
    %v1240 = vsel %vm135, %v1235, %v1239
    %v1241 = vshrl.u32 %v1227, 16
    %v1243 = vor.u32 %v1241, %v1239
    %v1245 = vshll.u32 %v1228, 16
    %v1247 = vrot.slane %v1245, 1
    %v1248 = vsel %vm135, %v1243, %v1247
    %v1249 = vshrl.u32 %v1228, 16
    %v1251 = vor.u32 %v1249, %v1247
    %v1271 = vunpack.c.l.b16 %v1200
    %v1272 = vunpack.c.l.b16 %v1201
    %v1273 = vunpack.c.l.b16 %v1202
    %v1274 = vunpack.c.l.b16 %v1203
    %v1275 = vunpack.c.l.b16 %v1204
    %v1276 = vunpack.c.l.b16 %v1205
    %v1277 = vunpack.c.l.b16 %v1206
    %v1278 = vunpack.c.l.b16 %v1207
    %v1279 = vunpack.c.l.b16 %v1208
    %v1280 = vunpack.c.l.b16 %v1209
    %v1281 = vunpack.c.l.b16 %v1210
    %v1282 = vunpack.c.l.b16 %v1211
    %v1283 = vunpack.c.l.b16 %v1212
    %v1284 = vunpack.c.l.b16 %v1213
    %v1285 = vunpack.c.l.b16 %v1214
    %v1286 = vunpack.c.l.b16 %v1215
    %v1287 = vpack.c.b16 %v1272, %v1271
    %v1288 = vpack.c.b16 %v1274, %v1273
    %v1289 = vpack.c.b16 %v1276, %v1275
    %v1290 = vpack.c.b16 %v1278, %v1277
    %v1291 = vpack.c.b16 %v1280, %v1279
    %v1292 = vpack.c.b16 %v1282, %v1281
    %v1293 = vpack.c.b16 %v1284, %v1283
    %v1294 = vpack.c.b16 %v1286, %v1285
    %1303 = vmatprep.subr.bf16.mxu0 0
    %1304 = vmatpush1.bf16.msra.mxu0 %v1287
    %1305 = vmatprep.subr.bf16.mxu0 0
    %1306 = vmatpush1.bf16.msra.mxu0 %v1288
    %1307 = vmatprep.subr.bf16.mxu0 0
    %1308 = vmatpush1.bf16.msra.mxu0 %v1289
    %1309 = vmatprep.subr.bf16.mxu0 0
    %1310 = vmatpush1.bf16.msra.mxu0 %v1290
    %1311 = vmatprep.subr.bf16.mxu0 0
    %1312 = vmatpush1.bf16.msra.mxu0 %v1291
    %1313 = vmatprep.subr.bf16.mxu0 0
    %1314 = vmatpush1.bf16.msra.mxu0 %v1292
    %1315 = vmatprep.subr.bf16.mxu0 0
    %1316 = vmatpush1.bf16.msra.mxu0 %v1293
    %1317 = vmatprep.subr.bf16.mxu0 0
    %1318 = vmatpush1.bf16.msra.mxu0 %v1294
    %1319 = vmatprep.subr.bf16.mxu0 0
    %1320 = vmatpush1.bf16.msra.mxu0 0
    %1321 = vmatprep.subr.bf16.mxu0 0
    %1322 = vmatpush1.bf16.msra.mxu0 0
    %1323 = vmatprep.subr.bf16.mxu0 0
    %1324 = vmatpush1.bf16.msra.mxu0 0
    %1325 = vmatprep.subr.bf16.mxu0 0
    %1326 = vmatpush1.bf16.msra.mxu0 0
    %1327 = vmatprep.subr.bf16.mxu0 0
    %1328 = vmatpush1.bf16.msra.mxu0 0
    %1329 = vmatprep.subr.bf16.mxu0 0
    %1330 = vmatpush1.bf16.msra.mxu0 0
    %1331 = vmatprep.subr.bf16.mxu0 0
    %1332 = vmatpush1.bf16.msra.mxu0 0
    %1333 = vmatprep.subr.bf16.mxu0 0
    %1334 = vmatpush1.bf16.msra.mxu0 0
    %1335 = vmatprep.mubr.bf16.mxu0 0
    %1336 = vmatmul.mubr.bf16.gmra.mrb[0].mxu0 %v1240
    %v1337 = vpop.f32.mrb[0].mxu0
    %v1338 = vadd.f32 0.0, %v1337
    %v1339 = vpop.f32.mrb[0].mxu0
    %v1340 = vpop.f32.mrb[0].mxu0
    %v1341 = vadd.f32 0.0, %v1340
    %v1342 = vpop.f32.mrb[0].mxu0
    %1343 = vmatprep.mubr.bf16.mxu0 0
    %1344 = vmatmul.mubr.bf16.gmra.mrb[0].mxu0 %v1248
    %v1345 = vpop.f32.mrb[0].mxu0
    %v1346 = vadd.f32 0.0, %v1345
    %v1347 = vpop.f32.mrb[0].mxu0
    %v1348 = vpop.f32.mrb[0].mxu0
    %v1349 = vadd.f32 0.0, %v1348
    %v1350 = vpop.f32.mrb[0].mxu0
    %1351 = vmatprep.mubr.bf16.mxu0 0
    %1352 = vmatmul.mubr.bf16.gmra.mrb[0].mxu0 %v1251
    %v1353 = vpop.f32.mrb[0].mxu0
    %v1354 = vadd.f32 0.0, %v1353
    %v1355 = vpop.f32.mrb[0].mxu0
    %v1356 = vpop.f32.mrb[0].mxu0
    %v1357 = vpop.f32.mrb[0].mxu0
    %1358 = vdwg.mxu0
    %v1360 = vunpack.c.l.b16 %v1181
    %v1361 = vpack.c.b16 %v1360, %v1360
    %v1381 = vunpack.c.l.b16 %v1182
    %v1382 = vunpack.c.l.b16 %v1183
    %v1383 = vunpack.c.l.b16 %v1184
    %v1384 = vunpack.c.l.b16 %v1185
    %v1385 = vunpack.c.l.b16 %v1186
    %v1386 = vunpack.c.l.b16 %v1187
    %v1387 = vunpack.c.l.b16 %v1188
    %v1388 = vunpack.c.l.b16 %v1189
    %v1389 = vunpack.c.l.b16 %v1190
    %v1390 = vunpack.c.l.b16 %v1191
    %v1391 = vunpack.c.l.b16 %v1192
    %v1392 = vunpack.c.l.b16 %v1193
    %v1393 = vunpack.c.l.b16 %v1194
    %v1394 = vunpack.c.l.b16 %v1195
    %v1395 = vunpack.c.l.b16 %v1196
    %v1396 = vunpack.c.l.b16 %v1197
    %v1397 = vpack.c.b16 %v1382, %v1381
    %v1398 = vpack.c.b16 %v1384, %v1383
    %v1399 = vpack.c.b16 %v1386, %v1385
    %v1400 = vpack.c.b16 %v1388, %v1387
    %v1401 = vpack.c.b16 %v1390, %v1389
    %v1402 = vpack.c.b16 %v1392, %v1391
    %v1403 = vpack.c.b16 %v1394, %v1393
    %v1404 = vpack.c.b16 %v1396, %v1395
    %1413 = vmatprep.subr.bf16.mxu0 0
    %1414 = vmatpush1.bf16.msra.mxu0 %v1397
    %1415 = vmatprep.subr.bf16.mxu0 0
    %1416 = vmatpush1.bf16.msra.mxu0 %v1398
    %1417 = vmatprep.subr.bf16.mxu0 0
    %1418 = vmatpush1.bf16.msra.mxu0 %v1399
    %1419 = vmatprep.subr.bf16.mxu0 0
    %1420 = vmatpush1.bf16.msra.mxu0 %v1400
    %1421 = vmatprep.subr.bf16.mxu0 0
    %1422 = vmatpush1.bf16.msra.mxu0 %v1401
    %1423 = vmatprep.subr.bf16.mxu0 0
    %1424 = vmatpush1.bf16.msra.mxu0 %v1402
    %1425 = vmatprep.subr.bf16.mxu0 0
    %1426 = vmatpush1.bf16.msra.mxu0 %v1403
    %1427 = vmatprep.subr.bf16.mxu0 0
    %1428 = vmatpush1.bf16.msra.mxu0 %v1404
    %1429 = vmatprep.subr.bf16.mxu0 0
    %1430 = vmatpush1.bf16.msra.mxu0 0
    %1431 = vmatprep.subr.bf16.mxu0 0
    %1432 = vmatpush1.bf16.msra.mxu0 0
    %1433 = vmatprep.subr.bf16.mxu0 0
    %1434 = vmatpush1.bf16.msra.mxu0 0
    %1435 = vmatprep.subr.bf16.mxu0 0
    %1436 = vmatpush1.bf16.msra.mxu0 0
    %1437 = vmatprep.subr.bf16.mxu0 0
    %1438 = vmatpush1.bf16.msra.mxu0 0
    %1439 = vmatprep.subr.bf16.mxu0 0
    %1440 = vmatpush1.bf16.msra.mxu0 0
    %1441 = vmatprep.subr.bf16.mxu0 0
    %1442 = vmatpush1.bf16.msra.mxu0 0
    %1443 = vmatprep.subr.bf16.mxu0 0
    %1444 = vmatpush1.bf16.msra.mxu0 0
    %1445 = vmatprep.mubr.bf16.mxu0 0
    %1446 = vmatmul.mubr.bf16.gmra.mrb[0].mxu0 %v1226
    %v1447 = vpop.f32.mrb[0].mxu0
    %v1448 = vadd.f32 %v1338, %v1447
    %v1449 = vpop.f32.mrb[0].mxu0
    %v1450 = vpop.f32.mrb[0].mxu0
    %v1451 = vadd.f32 %v1341, %v1450
    %v1452 = vpop.f32.mrb[0].mxu0
    %1453 = vmatprep.mubr.bf16.mxu0 0
    %1454 = vmatmul.mubr.bf16.gmra.mrb[0].mxu0 %v1227
    %v1455 = vpop.f32.mrb[0].mxu0
    %v1456 = vadd.f32 %v1346, %v1455
    %v1457 = vpop.f32.mrb[0].mxu0
    %v1458 = vpop.f32.mrb[0].mxu0
    %v1459 = vadd.f32 %v1349, %v1458
    %v1460 = vpop.f32.mrb[0].mxu0
    %1461 = vmatprep.mubr.bf16.mxu0 0
    %1462 = vmatmul.mubr.bf16.gmra.mrb[0].mxu0 %v1361
    %v1463 = vpop.f32.mrb[0].mxu0
    %v1464 = vadd.f32 %v1354, %v1463
    %v1465 = vpop.f32.mrb[0].mxu0
    %v1466 = vpop.f32.mrb[0].mxu0
    %v1467 = vpop.f32.mrb[0].mxu0
    %1468 = vdwg.mxu0
    %v1469 = vld [vmem:[#allocation3] sm:$0xe]
    %s1470 = scalar_lea.vmem [#allocation10], 128
    %v1471 = vld [vmem:[%s1470] sm:$0xf]
    %v1472 = vld [vmem:[%s1470 + $0x4] sm:$0xf]
    %v1473 = vld [vmem:[%s1470 + $0x8] sm:$0xf]
    %v1474 = vld [vmem:[%s1470 + $0xc] sm:$0xf]
    %v1475 = vld [vmem:[%s1470 + $0x10] sm:$0xf]
    %v1476 = vld [vmem:[%s1470 + $0x14] sm:$0xf]
    %v1477 = vld [vmem:[%s1470 + $0x18] sm:$0xf]
    %v1478 = vld [vmem:[%s1470 + $0x1c] sm:$0xf]
    %v1479 = vld [vmem:[%s1470 + $0x20] sm:$0xf]
    %v1480 = vld [vmem:[%s1470 + $0x24] sm:$0xf]
    %v1481 = vld [vmem:[%s1470 + $0x28] sm:$0xf]
    %v1482 = vld [vmem:[%s1470 + $0x2c] sm:$0xf]
    %v1483 = vld [vmem:[%s1470 + $0x30] sm:$0xf]
    %v1484 = vld [vmem:[%s1470 + $0x34] sm:$0xf]
    %v1485 = vld [vmem:[%s1470 + $0x38] sm:$0xf]
    %v1486 = vld [vmem:[%s1470 + $0x3c] sm:$0xf]
    %v1488 = vunpack.c.l.b16 %v1469
    %v1489 = vpack.c.b16 %v1222, %v1488
    %v1490 = vrot.slane %v1489, 1
    %v1491 = vrot.slane %v1227, 1
    %v1492 = vsel %vm397, %v1490, %v1491
    %v1493 = vrot.slane %v1228, 1
    %v1494 = vsel %vm397, %v1491, %v1493
    %v1514 = vunpack.c.l.b16 %v1471
    %v1515 = vunpack.c.l.b16 %v1472
    %v1516 = vunpack.c.l.b16 %v1473
    %v1517 = vunpack.c.l.b16 %v1474
    %v1518 = vunpack.c.l.b16 %v1475
    %v1519 = vunpack.c.l.b16 %v1476
    %v1520 = vunpack.c.l.b16 %v1477
    %v1521 = vunpack.c.l.b16 %v1478
    %v1522 = vunpack.c.l.b16 %v1479
    %v1523 = vunpack.c.l.b16 %v1480
    %v1524 = vunpack.c.l.b16 %v1481
    %v1525 = vunpack.c.l.b16 %v1482
    %v1526 = vunpack.c.l.b16 %v1483
    %v1527 = vunpack.c.l.b16 %v1484
    %v1528 = vunpack.c.l.b16 %v1485
    %v1529 = vunpack.c.l.b16 %v1486
    %v1530 = vpack.c.b16 %v1515, %v1514
    %v1531 = vpack.c.b16 %v1517, %v1516
    %v1532 = vpack.c.b16 %v1519, %v1518
    %v1533 = vpack.c.b16 %v1521, %v1520
    %v1534 = vpack.c.b16 %v1523, %v1522
    %v1535 = vpack.c.b16 %v1525, %v1524
    %v1536 = vpack.c.b16 %v1527, %v1526
    %v1537 = vpack.c.b16 %v1529, %v1528
    %1546 = vmatprep.subr.bf16.mxu0 0
    %1547 = vmatpush1.bf16.msra.mxu0 %v1530
    %1548 = vmatprep.subr.bf16.mxu0 0
    %1549 = vmatpush1.bf16.msra.mxu0 %v1531
    %1550 = vmatprep.subr.bf16.mxu0 0
    %1551 = vmatpush1.bf16.msra.mxu0 %v1532
    %1552 = vmatprep.subr.bf16.mxu0 0
    %1553 = vmatpush1.bf16.msra.mxu0 %v1533
    %1554 = vmatprep.subr.bf16.mxu0 0
    %1555 = vmatpush1.bf16.msra.mxu0 %v1534
    %1556 = vmatprep.subr.bf16.mxu0 0
    %1557 = vmatpush1.bf16.msra.mxu0 %v1535
    %1558 = vmatprep.subr.bf16.mxu0 0
    %1559 = vmatpush1.bf16.msra.mxu0 %v1536
    %1560 = vmatprep.subr.bf16.mxu0 0
    %1561 = vmatpush1.bf16.msra.mxu0 %v1537
    %1562 = vmatprep.subr.bf16.mxu0 0
    %1563 = vmatpush1.bf16.msra.mxu0 0
    %1564 = vmatprep.subr.bf16.mxu0 0
    %1565 = vmatpush1.bf16.msra.mxu0 0
    %1566 = vmatprep.subr.bf16.mxu0 0
    %1567 = vmatpush1.bf16.msra.mxu0 0
    %1568 = vmatprep.subr.bf16.mxu0 0
    %1569 = vmatpush1.bf16.msra.mxu0 0
    %1570 = vmatprep.subr.bf16.mxu0 0
    %1571 = vmatpush1.bf16.msra.mxu0 0
    %1572 = vmatprep.subr.bf16.mxu0 0
    %1573 = vmatpush1.bf16.msra.mxu0 0
    %1574 = vmatprep.subr.bf16.mxu0 0
    %1575 = vmatpush1.bf16.msra.mxu0 0
    %1576 = vmatprep.subr.bf16.mxu0 0
    %1577 = vmatpush1.bf16.msra.mxu0 0
    %1578 = vmatprep.mubr.bf16.mxu0 0
    %1579 = vmatmul.mubr.bf16.gmra.mrb[0].mxu0 %v1492
    %v1580 = vpop.f32.mrb[0].mxu0
    %v1581 = vadd.f32 0.0, %v1580
    %v1582 = vpop.f32.mrb[0].mxu0
    %v1583 = vpop.f32.mrb[0].mxu0
    %v1584 = vadd.f32 0.0, %v1583
    %v1585 = vpop.f32.mrb[0].mxu0
    %1586 = vmatprep.mubr.bf16.mxu0 0
    %1587 = vmatmul.mubr.bf16.gmra.mrb[0].mxu0 %v1494
    %v1588 = vpop.f32.mrb[0].mxu0
    %v1589 = vadd.f32 0.0, %v1588
    %v1590 = vpop.f32.mrb[0].mxu0
    %v1591 = vpop.f32.mrb[0].mxu0
    %v1592 = vadd.f32 0.0, %v1591
    %v1593 = vpop.f32.mrb[0].mxu0
    %1594 = vmatprep.mubr.bf16.mxu0 0
    %1595 = vmatmul.mubr.bf16.gmra.mrb[0].mxu0 %v1493
    %v1596 = vpop.f32.mrb[0].mxu0
    %v1597 = vadd.f32 0.0, %v1596
    %v1598 = vpop.f32.mrb[0].mxu0
    %v1599 = vpop.f32.mrb[0].mxu0
    %v1600 = vpop.f32.mrb[0].mxu0
    %1601 = vdwg.mxu0
    %v1602 = vadd.f32 %v1448, %v1581
    %v1603 = vadd.f32 %v1451, %v1584
    %v1604 = vadd.f32 %v1456, %v1589
    %v1605 = vadd.f32 %v1459, %v1592
    %v1606 = vadd.f32 %v1464, %v1597
    %v1607 = vld [vmem:[%s6] sm:$0x1]
    %v1609 = vlaneseq
    %v1610 = vshrl.u32 %v1609, 7
    %v1611 = vsub.s32 0, %v1610
    %v1612 = vrot.slane %v1607, %v1611
    %v1614 = vadd.f32 %v1602, %v1612
    %v1615 = vadd.f32 %v1603, %v1612
    %v1616 = vadd.f32 %v1604, %v1612
    %v1617 = vadd.f32 %v1605, %v1612
    %v1618 = vadd.f32 %v1606, %v1612
    %v1619 = vxor.u32 %v1614, 2147483648
    %v1620 = vxor.u32 %v1615, 2147483648
    %v1621 = vxor.u32 %v1616, 2147483648
    %v1622 = vxor.u32 %v1617, 2147483648
    %v1623 = vxor.u32 %v1618, 2147483648
    %v1624 = vmul.f32 %v1619, 1.442695
    %v1625 = vpow.pop %v1624
    %v1626 = vmul.f32 %v1620, 1.442695
    %v1627 = vpow.pop %v1626
    %v1628 = vmul.f32 %v1621, 1.442695
    %v1629 = vpow.pop %v1628
    %v1630 = vmul.f32 %v1622, 1.442695
    %v1631 = vpow.pop %v1630
    %v1632 = vmul.f32 %v1623, 1.442695
    %v1633 = vpow.pop %v1632
    %v1634 = vadd.f32 %v1625, 1.0
    %v1635 = vadd.f32 %v1627, 1.0
    %v1636 = vadd.f32 %v1629, 1.0
    %v1637 = vadd.f32 %v1631, 1.0
    %v1638 = vadd.f32 %v1633, 1.0
    %v1639 = vrcp.pop %v1634
    %v1640 = vmul.f32 1.0, %v1639
    %v1641 = vrcp.pop %v1635
    %v1642 = vmul.f32 1.0, %v1641
    %v1643 = vrcp.pop %v1636
    %v1644 = vmul.f32 1.0, %v1643
    %v1645 = vrcp.pop %v1637
    %v1646 = vmul.f32 1.0, %v1645
    %v1647 = vrcp.pop %v1638
    %v1648 = vmul.f32 1.0, %v1647
    %1649 = vst [vmem:[#allocation12] sm:$0xff] %v1640
    %1650 = vst [vmem:[#allocation12 + $0x8] sm:$0xff] %v1642
    %1651 = vst [vmem:[#allocation12 + $0xe] sm:$0xfc] %v1644
    %1652 = vst [vmem:[#allocation12 + $0x16] sm:$0xff] %v1646
    %1653 = vst [vmem:[#allocation12 + $0x1e] sm:$0x3] %v1648
    // Predicated region
    $region46: #{tpu_custom_call.1} parent=1 // pred_check
      _
    $region47: #{tpu_custom_call.1} parent=1 // pred_check_branch
      %1655 = sbr.rel (0) target = $region49
    $region48: #{tpu_custom_call.1} parent=1 // pred_region
      %s1657 = ssub.s32 512, 512
      %1658 = vsyncadd [#allocation6], %s1657
      %s1659 = sshll.u32 [#allocation12], 4
      %s1660 = int_to_ptr.vmem [resolvable:$true] %s1659
      %1665 = dma.vmem_to_hbm [thread:$0]  %s1660, 512, %s7, [#allocation6], 128, 128, 8
    $region49: #{tpu_custom_call.1} parent=1 // pred_fallthru
      _
    // Predicated region
    $region50: #{tpu_custom_call.1} parent=1 // pred_check
      _
    $region51: #{tpu_custom_call.1} parent=1 // pred_check_branch
      %1667 = sbr.rel (0) target = $region53
    $region52: #{tpu_custom_call.1} parent=1 // pred_region
      %1668 = dma.done [#allocation6], 512
    $region53: #{tpu_custom_call.1} parent=1 // pred_fallthru
      _
    %1669 = vsyncpa [#allocation5], 1
    %1670 = vsyncpa [#allocation8], 1
    %1671 = vsyncpa [#allocation11], 1
    %1672 = vsyncpa [#allocation6], 1

</llo_original>
